<compile_context>
chip_gen: v7x
topology: tpu7x:2x2x1
jax: 0.10.0
libtpu: 0.0.40
codegen_flags: <defaults>
</compile_context>

<pallas_src>
import functools

import jax
import jax.numpy as jnp
from jax.experimental import pallas as pl
from jax.experimental.pallas import tpu as pltpu


def attention_kernel(x_ref, mask_ref, gamma_ref, beta_ref,
                     w_in_ref, b_in_ref, w_out_ref, b_out_ref, o_ref,
                     *, num_heads: int, exact: bool):
    # x_ref:     (Bt, S, H)       batch tile
    # mask_ref:  (Bt, 1, S)       radial mask (broadcast over the key axis)
    # gamma/beta:(1, H)           layernorm affine params (f32)
    # w_in:      (H, 3H)          math layout (x @ W); bf16 in fast mode
    # b_in:      (1, 3H)  f32
    # w_out:     (nh, hd, H)      out_proj weight, pre-reshaped per head
    # b_out:     (1, H)   f32
    Bt, S, H = x_ref.shape
    hd = H // num_heads
    R = Bt * S                      # rows fed to the projection matmuls
    BH = num_heads * Bt             # merged (head, batch-tile) einsum batch dim
    mm_dtype = w_in_ref.dtype       # bf16 in fast mode, f32 in exact mode
    scale = 1.0 / (hd ** 0.5)

    x = x_ref[...].reshape(R, H)                       # (R, H) f32

    # ---- LayerNorm (eps = 1e-5, torch.nn.LayerNorm default); f32 VPU math ----
    mean = jnp.mean(x, axis=-1, keepdims=True)
    var = jnp.mean((x - mean) ** 2, axis=-1, keepdims=True)
    xn = (x - mean) * jax.lax.rsqrt(var + 1e-5)
    xn = xn * gamma_ref[...] + beta_ref[...]           # (R, H)

    # ---- QKV projection: one MXU matmul, f32 accumulation ----
    qkv = jnp.dot(xn.astype(mm_dtype), w_in_ref[...],
                  preferred_element_type=jnp.float32) + b_in_ref[...]   # (R, 3H)

    def split_heads(base):
        # (R, H) strip -> (nh, R, hd) via leading-axis stack -> (nh*Bt, S, hd).
        # Head-major batch ordering: g = h*Bt + b.
        cols = [qkv[:, base + h * hd: base + (h + 1) * hd]
                for h in range(num_heads)]             # each (R, hd)
        t = jnp.stack(cols, axis=0)                    # (nh, R, hd)
        return t.reshape(BH, S, hd)

    q = split_heads(0 * H) * scale                     # fold 1/sqrt(hd) into q
    k = split_heads(1 * H)
    v = split_heads(2 * H)

    # ---- scores: one batched contraction over (head, batch); no k.T ----
    s = jnp.einsum('bqd,bkd->bqk', q.astype(mm_dtype), k.astype(mm_dtype),
                   preferred_element_type=jnp.float32)                  # (BH,S,S)

    # ---- fused softmax + radial-mask renormalization (f32 elementwise) ----
    mask = mask_ref[...]                                                # (Bt,1,S)
    mask_b = jnp.broadcast_to(mask[None], (num_heads, Bt, 1, S)).reshape(BH, 1, S)
    m = jnp.max(s, axis=-1, keepdims=True)
    e = jnp.exp(s - m)
    em = e * mask_b
    denom = (jnp.sum(em, axis=-1, keepdims=True)
             + 1e-6 * jnp.sum(e, axis=-1, keepdims=True))
    if exact:
        p = em / denom
    else:
        p = em * pl.reciprocal(denom, approx=True)     # divide on the EUP slot

    # ---- P @ V, batched over (head, batch) ----
    attn = jnp.einsum('bqk,bkd->bqd', p.astype(mm_dtype), v.astype(mm_dtype),
                      preferred_element_type=jnp.float32)               # (BH,S,hd)

    # ---- output projection with the head-concat absorbed into a per-head
    #      batched matmul + sum (no lane-axis concatenate / relayout) ----
    #   out[r, :] = sum_h attn[h, r, :] @ W_out[h*hd:(h+1)*hd, :]
    attn_r = attn.reshape(num_heads, R, hd)
    out_h = jnp.einsum('hrd,hdf->hrf', attn_r.astype(mm_dtype), w_out_ref[...],
                       preferred_element_type=jnp.float32)              # (nh,R,H)
    out = jnp.sum(out_h, axis=0) + b_out_ref[...]                       # (R, H)

    o_ref[...] = out.reshape(Bt, S, H).astype(o_ref.dtype)


def _pick_batch_tile(batch, seq):
    """Bt*S >= ~128 rows per grid step when possible, but keep >= 2 grid steps
    (so both v7x TensorCores get work) and require Bt | batch."""
    bt = max(1, min(batch, max(1, 128 // max(seq, 1))))
    while batch % bt != 0:
        bt -= 1
    if batch // bt < 2 and batch >= 2:
        bt = max(1, batch // 2)
        while batch % bt != 0:
            bt -= 1
    return max(bt, 1)


def attention_block(x, radial_mask, params, *, num_heads, exact=False,
                    batch_tile=None):
    B, S, H = x.shape
    gamma, beta, w_in, b_in, w_out, b_out = params
    hd = H // num_heads

    Bt = _pick_batch_tile(B, S) if batch_tile is None else batch_tile
    assert B % Bt == 0

    # bf16 weights in fast mode: halves weight DMA bytes & VMEM footprint.
    mm_dtype = jnp.float32 if exact else jnp.bfloat16
    w_in_p = w_in.astype(mm_dtype)                          # (H, 3H)
    w_out_p = w_out.reshape(num_heads, hd, H).astype(mm_dtype)  # (nh, hd, H)

    mask3 = radial_mask.reshape(B, 1, S).astype(jnp.float32)
    gamma2 = gamma.reshape(1, H)
    beta2 = beta.reshape(1, H)
    b_in2 = b_in.reshape(1, 3 * H)
    b_out2 = b_out.reshape(1, H)

    kernel = functools.partial(attention_kernel, num_heads=num_heads, exact=exact)

    return pl.pallas_call(
        kernel,
        out_shape=jax.ShapeDtypeStruct((B, S, H), x.dtype),
        grid=(B // Bt,),
        in_specs=[
            pl.BlockSpec((Bt, S, H), lambda b: (b, 0, 0)),          # inputs
            pl.BlockSpec((Bt, 1, S), lambda b: (b, 0, 0)),          # radial mask
            pl.BlockSpec((1, H), lambda b: (0, 0)),                 # ln gamma
            pl.BlockSpec((1, H), lambda b: (0, 0)),                 # ln beta
            pl.BlockSpec((H, 3 * H), lambda b: (0, 0)),             # in_proj W
            pl.BlockSpec((1, 3 * H), lambda b: (0, 0)),             # in_proj b
            pl.BlockSpec((num_heads, hd, H), lambda b: (0, 0, 0)),  # out_proj W
            pl.BlockSpec((1, H), lambda b: (0, 0)),                 # out_proj b
        ],
        out_specs=pl.BlockSpec((Bt, S, H), lambda b: (b, 0, 0)),
        compiler_params=pltpu.CompilerParams(
            dimension_semantics=("parallel",)),
    )(x, mask3, gamma2, beta2, w_in_p, b_in2, w_out_p, b_out2)


def reference_attention_block(x, radial_mask, params, *, num_heads):
    """Pure-JAX f32 reference mirroring the PyTorch forward (eval mode)."""
    gamma, beta, w_in, b_in, w_out, b_out = params
    B, S, H = x.shape
    hd = H // num_heads

    mean = jnp.mean(x, axis=-1, keepdims=True)
    var = jnp.mean((x - mean) ** 2, axis=-1, keepdims=True)
    xn = (x - mean) / jnp.sqrt(var + 1e-5) * gamma + beta

    qkv = xn @ w_in + b_in
    q, k, v = jnp.split(qkv, 3, axis=-1)
    q = q.reshape(B, S, num_heads, hd).transpose(0, 2, 1, 3)
    k = k.reshape(B, S, num_heads, hd).transpose(0, 2, 1, 3)
    v = v.reshape(B, S, num_heads, hd).transpose(0, 2, 1, 3)

    attn = jnp.einsum("bhqd,bhkd->bhqk", q, k) / (hd ** 0.5)
    attn = jax.nn.softmax(attn, axis=-1)
    attn = attn * radial_mask[:, None, None, :]
    attn = attn / (jnp.sum(attn, axis=-1, keepdims=True) + 1e-6)
    out = jnp.einsum("bhqk,bhkd->bhqd", attn, v)
    out = out.transpose(0, 2, 1, 3).reshape(B, S, H)
    return out @ w_out + b_out


def init_params(key, hidden_size):
    """Deterministic parameter init (xavier-uniform in_proj, zero biases)."""
    k1, k2 = jax.random.split(key)
    H = hidden_size
    bound_in = (6.0 / (H + 3 * H)) ** 0.5
    w_in = jax.random.uniform(k1, (H, 3 * H), jnp.float32, -bound_in, bound_in)
    b_in = jnp.zeros((3 * H,), jnp.float32)
    bound_out = (1.0 / H) ** 0.5
    w_out = jax.random.uniform(k2, (H, H), jnp.float32, -bound_out, bound_out)
    b_out = jnp.zeros((H,), jnp.float32)
    gamma = jnp.ones((H,), jnp.float32)
    beta = jnp.zeros((H,), jnp.float32)
    return (gamma, beta, w_in, b_in, w_out, b_out)


if __name__ == "__main__":
    B, S, H = 2, 8, 32
    NUM_HEADS = 4

    key = jax.random.PRNGKey(0)
    kx, km, kp = jax.random.split(key, 3)

    x = jax.random.normal(kx, (B, S, H), jnp.float32)
    radial_mask = jax.random.uniform(km, (B, S), jnp.float32, 0.1, 1.0)
    params = init_params(kp, H)

    ref = reference_attention_block(x, radial_mask, params, num_heads=NUM_HEADS)

    # exact (all-f32) path: faithful to the module's numerics
    out_exact = attention_block(x, radial_mask, params,
                                num_heads=NUM_HEADS, exact=True)
    out_exact = jax.block_until_ready(out_exact)
    assert out_exact.shape == (B, S, H)
    assert jnp.allclose(out_exact, ref, atol=1e-4, rtol=1e-4), (
        f"exact path max abs err {jnp.max(jnp.abs(out_exact - ref))}")

    # fast path: bf16 MXU operands (f32 accumulation) + EUP approx reciprocal
    out_fast = attention_block(x, radial_mask, params,
                               num_heads=NUM_HEADS, exact=False)
    out_fast = jax.block_until_ready(out_fast)
    assert out_fast.shape == (B, S, H)
    assert jnp.allclose(out_fast, ref, atol=5e-2, rtol=5e-2), (
        f"fast path max abs err {jnp.max(jnp.abs(out_fast - ref))}")

    print("KERNEL_OK")
</pallas_src>

<mosaic_0001>
module attributes {stable_mosaic.version = 11 : i64} {
  func.func @attention_kernel(%arg0: i32, %arg1: memref<1x8x32xf32, #tpu.memory_space<vmem>>, %arg2: memref<1x1x8xf32, #tpu.memory_space<vmem>>, %arg3: memref<1x32xf32, #tpu.memory_space<vmem>>, %arg4: memref<1x32xf32, #tpu.memory_space<vmem>>, %arg5: memref<32x96xf32, #tpu.memory_space<vmem>>, %arg6: memref<1x96xf32, #tpu.memory_space<vmem>>, %arg7: memref<4x8x32xf32, #tpu.memory_space<vmem>>, %arg8: memref<1x32xf32, #tpu.memory_space<vmem>>, %arg9: memref<1x8x32xf32, #tpu.memory_space<vmem>>) attributes {dimension_semantics = [#tpu.dimension_semantics<parallel>], iteration_bounds = array<i64: 2>, scalar_prefetch = 0 : i64, scratch_operands = 0 : i64, tpu.core_type = #tpu.core_type<tc>, window_params = [{transform_indices = @transform_0, window_bounds = array<i64: 1, 8, 32>}, {transform_indices = @transform_1, window_bounds = array<i64: 1, 1, 8>}, {pipeline_mode = #tpu.pipeline_mode<synchronous>, transform_indices = @transform_2, window_bounds = array<i64: 1, 32>}, {pipeline_mode = #tpu.pipeline_mode<synchronous>, transform_indices = @transform_3, window_bounds = array<i64: 1, 32>}, {pipeline_mode = #tpu.pipeline_mode<synchronous>, transform_indices = @transform_4, window_bounds = array<i64: 32, 96>}, {pipeline_mode = #tpu.pipeline_mode<synchronous>, transform_indices = @transform_5, window_bounds = array<i64: 1, 96>}, {pipeline_mode = #tpu.pipeline_mode<synchronous>, transform_indices = @transform_6, window_bounds = array<i64: 4, 8, 32>}, {pipeline_mode = #tpu.pipeline_mode<synchronous>, transform_indices = @transform_7, window_bounds = array<i64: 1, 32>}, {transform_indices = @transform_8, window_bounds = array<i64: 1, 8, 32>}]} {
    %c0 = arith.constant 0 : index
    %c0_0 = arith.constant 0 : index
    %c0_1 = arith.constant 0 : index
    %0 = vector.load %arg1[%c0, %c0_0, %c0_1] : memref<1x8x32xf32, #tpu.memory_space<vmem>>, vector<1x8x32xf32>
    %1 = vector.shape_cast %0 : vector<1x8x32xf32> to vector<8x32xf32>
    %cst = arith.constant dense<0.000000e+00> : vector<8xf32>
    %2 = vector.multi_reduction <add>, %1, %cst [1] : vector<8x32xf32> to vector<8xf32>
    %3 = vector.shape_cast %2 : vector<8xf32> to vector<8x1xf32>
    %cst_2 = arith.constant 3.200000e+01 : f32
    %4 = vector.broadcast %cst_2 : f32 to vector<8x1xf32>
    %5 = arith.divf %3, %4 : vector<8x1xf32>
    %6 = vector.broadcast %5 : vector<8x1xf32> to vector<8x32xf32>
    %7 = arith.subf %1, %6 : vector<8x32xf32>
    %8 = arith.mulf %7, %7 : vector<8x32xf32>
    %cst_3 = arith.constant dense<0.000000e+00> : vector<8xf32>
    %9 = vector.multi_reduction <add>, %8, %cst_3 [1] : vector<8x32xf32> to vector<8xf32>
    %10 = vector.shape_cast %9 : vector<8xf32> to vector<8x1xf32>
    %cst_4 = arith.constant 3.200000e+01 : f32
    %11 = vector.broadcast %cst_4 : f32 to vector<8x1xf32>
    %12 = arith.divf %10, %11 : vector<8x1xf32>
    %13 = vector.broadcast %5 : vector<8x1xf32> to vector<8x32xf32>
    %14 = arith.subf %1, %13 : vector<8x32xf32>
    %cst_5 = arith.constant 9.99999974E-6 : f32
    %15 = vector.broadcast %cst_5 : f32 to vector<8x1xf32>
    %16 = arith.addf %12, %15 : vector<8x1xf32>
    %17 = math.rsqrt %16 : vector<8x1xf32>
    %18 = vector.broadcast %17 : vector<8x1xf32> to vector<8x32xf32>
    %19 = arith.mulf %14, %18 : vector<8x32xf32>
    %c0_6 = arith.constant 0 : index
    %c0_7 = arith.constant 0 : index
    %20 = vector.load %arg3[%c0_6, %c0_7] : memref<1x32xf32, #tpu.memory_space<vmem>>, vector<1x32xf32>
    %21 = vector.broadcast %20 : vector<1x32xf32> to vector<8x32xf32>
    %22 = arith.mulf %19, %21 : vector<8x32xf32>
    %c0_8 = arith.constant 0 : index
    %c0_9 = arith.constant 0 : index
    %23 = vector.load %arg4[%c0_8, %c0_9] : memref<1x32xf32, #tpu.memory_space<vmem>>, vector<1x32xf32>
    %24 = vector.broadcast %23 : vector<1x32xf32> to vector<8x32xf32>
    %25 = arith.addf %22, %24 : vector<8x32xf32>
    %c0_10 = arith.constant 0 : index
    %c0_11 = arith.constant 0 : index
    %26 = vector.load %arg5[%c0_10, %c0_11] : memref<32x96xf32, #tpu.memory_space<vmem>>, vector<32x96xf32>
    %cst_12 = arith.constant dense<0.000000e+00> : vector<8x96xf32>
    %27 = tpu.matmul %25, %26, %cst_12 {dimension_numbers = #tpu.dot_dimension_numbers<[1], [0], [0], [1], [0, 0, 1, 1], [], []>} : vector<8x32xf32>, vector<32x96xf32>, vector<8x96xf32> -> vector<8x96xf32>
    %c0_13 = arith.constant 0 : index
    %c0_14 = arith.constant 0 : index
    %28 = vector.load %arg6[%c0_13, %c0_14] : memref<1x96xf32, #tpu.memory_space<vmem>>, vector<1x96xf32>
    %29 = vector.broadcast %28 : vector<1x96xf32> to vector<8x96xf32>
    %30 = arith.addf %27, %29 : vector<8x96xf32>
    %31 = vector.extract_strided_slice %30 {offsets = [0, 0], sizes = [8, 8], strides = [1, 1]} : vector<8x96xf32> to vector<8x8xf32>
    %32 = vector.extract_strided_slice %30 {offsets = [0, 8], sizes = [8, 8], strides = [1, 1]} : vector<8x96xf32> to vector<8x8xf32>
    %33 = vector.extract_strided_slice %30 {offsets = [0, 16], sizes = [8, 8], strides = [1, 1]} : vector<8x96xf32> to vector<8x8xf32>
    %34 = vector.extract_strided_slice %30 {offsets = [0, 24], sizes = [8, 8], strides = [1, 1]} : vector<8x96xf32> to vector<8x8xf32>
    %35 = vector.shape_cast %31 : vector<8x8xf32> to vector<1x8x8xf32>
    %36 = vector.shape_cast %32 : vector<8x8xf32> to vector<1x8x8xf32>
    %37 = vector.shape_cast %33 : vector<8x8xf32> to vector<1x8x8xf32>
    %38 = vector.shape_cast %34 : vector<8x8xf32> to vector<1x8x8xf32>
    %39 = tpu.concatenate %35, %36, %37, %38 in 0 : vector<1x8x8xf32>, vector<1x8x8xf32>, vector<1x8x8xf32>, vector<1x8x8xf32> -> vector<4x8x8xf32>
    %cst_15 = arith.constant 0.353553385 : f32
    %40 = vector.broadcast %cst_15 : f32 to vector<4x8x8xf32>
    %41 = arith.mulf %39, %40 : vector<4x8x8xf32>
    %42 = vector.extract_strided_slice %30 {offsets = [0, 32], sizes = [8, 8], strides = [1, 1]} : vector<8x96xf32> to vector<8x8xf32>
    %43 = vector.extract_strided_slice %30 {offsets = [0, 40], sizes = [8, 8], strides = [1, 1]} : vector<8x96xf32> to vector<8x8xf32>
    %44 = vector.extract_strided_slice %30 {offsets = [0, 48], sizes = [8, 8], strides = [1, 1]} : vector<8x96xf32> to vector<8x8xf32>
    %45 = vector.extract_strided_slice %30 {offsets = [0, 56], sizes = [8, 8], strides = [1, 1]} : vector<8x96xf32> to vector<8x8xf32>
    %46 = vector.shape_cast %42 : vector<8x8xf32> to vector<1x8x8xf32>
    %47 = vector.shape_cast %43 : vector<8x8xf32> to vector<1x8x8xf32>
    %48 = vector.shape_cast %44 : vector<8x8xf32> to vector<1x8x8xf32>
    %49 = vector.shape_cast %45 : vector<8x8xf32> to vector<1x8x8xf32>
    %50 = tpu.concatenate %46, %47, %48, %49 in 0 : vector<1x8x8xf32>, vector<1x8x8xf32>, vector<1x8x8xf32>, vector<1x8x8xf32> -> vector<4x8x8xf32>
    %51 = vector.extract_strided_slice %30 {offsets = [0, 64], sizes = [8, 8], strides = [1, 1]} : vector<8x96xf32> to vector<8x8xf32>
    %52 = vector.extract_strided_slice %30 {offsets = [0, 72], sizes = [8, 8], strides = [1, 1]} : vector<8x96xf32> to vector<8x8xf32>
    %53 = vector.extract_strided_slice %30 {offsets = [0, 80], sizes = [8, 8], strides = [1, 1]} : vector<8x96xf32> to vector<8x8xf32>
    %54 = vector.extract_strided_slice %30 {offsets = [0, 88], sizes = [8, 8], strides = [1, 1]} : vector<8x96xf32> to vector<8x8xf32>
    %55 = vector.shape_cast %51 : vector<8x8xf32> to vector<1x8x8xf32>
    %56 = vector.shape_cast %52 : vector<8x8xf32> to vector<1x8x8xf32>
    %57 = vector.shape_cast %53 : vector<8x8xf32> to vector<1x8x8xf32>
    %58 = vector.shape_cast %54 : vector<8x8xf32> to vector<1x8x8xf32>
    %59 = tpu.concatenate %55, %56, %57, %58 in 0 : vector<1x8x8xf32>, vector<1x8x8xf32>, vector<1x8x8xf32>, vector<1x8x8xf32> -> vector<4x8x8xf32>
    "tpu.trace_start"() <{level = 10 : i32, message = "bqd,bkd->bqk"}> : () -> ()
    %cst_16 = arith.constant dense<0.000000e+00> : vector<4x8x8xf32>
    %60 = tpu.matmul %41, %50, %cst_16 {dimension_numbers = #tpu.dot_dimension_numbers<[2], [2], [1], [1], [0, 0, 0, 1, 1, 1], [0], [0]>} : vector<4x8x8xf32>, vector<4x8x8xf32>, vector<4x8x8xf32> -> vector<4x8x8xf32>
    "tpu.trace_stop"() : () -> ()
    %c0_17 = arith.constant 0 : index
    %c0_18 = arith.constant 0 : index
    %c0_19 = arith.constant 0 : index
    %61 = vector.load %arg2[%c0_17, %c0_18, %c0_19] : memref<1x1x8xf32, #tpu.memory_space<vmem>>, vector<1x1x8xf32>
    %62 = vector.shape_cast %61 : vector<1x1x8xf32> to vector<1x1x1x8xf32>
    %63 = vector.shape_cast %62 : vector<1x1x1x8xf32> to vector<1x1x1x8xf32>
    %64 = vector.broadcast %63 : vector<1x1x1x8xf32> to vector<4x1x1x8xf32>
    %65 = vector.shape_cast %64 : vector<4x1x1x8xf32> to vector<4x1x8xf32>
    %cst_20 = arith.constant dense<0xFF800000> : vector<4x8xf32>
    %66 = vector.multi_reduction <maximumf>, %60, %cst_20 [2] : vector<4x8x8xf32> to vector<4x8xf32>
    %67 = vector.shape_cast %66 : vector<4x8xf32> to vector<4x8x1xf32>
    %68 = vector.broadcast %67 : vector<4x8x1xf32> to vector<4x8x8xf32>
    %69 = arith.subf %60, %68 : vector<4x8x8xf32>
    %70 = math.exp %69 : vector<4x8x8xf32>
    %71 = vector.broadcast %65 : vector<4x1x8xf32> to vector<4x8x8xf32>
    %72 = arith.mulf %70, %71 : vector<4x8x8xf32>
    %cst_21 = arith.constant dense<0.000000e+00> : vector<4x8xf32>
    %73 = vector.multi_reduction <add>, %72, %cst_21 [2] : vector<4x8x8xf32> to vector<4x8xf32>
    %74 = vector.shape_cast %73 : vector<4x8xf32> to vector<4x8x1xf32>
    %cst_22 = arith.constant dense<0.000000e+00> : vector<4x8xf32>
    %75 = vector.multi_reduction <add>, %70, %cst_22 [2] : vector<4x8x8xf32> to vector<4x8xf32>
    %76 = vector.shape_cast %75 : vector<4x8xf32> to vector<4x8x1xf32>
    %cst_23 = arith.constant 9.99999997E-7 : f32
    %77 = vector.broadcast %cst_23 : f32 to vector<4x8x1xf32>
    %78 = arith.mulf %77, %76 : vector<4x8x1xf32>
    %79 = arith.addf %74, %78 : vector<4x8x1xf32>
    %80 = vector.broadcast %79 : vector<4x8x1xf32> to vector<4x8x8xf32>
    %81 = arith.divf %72, %80 : vector<4x8x8xf32>
    "tpu.trace_start"() <{level = 10 : i32, message = "bqk,bkd->bqd"}> : () -> ()
    %cst_24 = arith.constant dense<0.000000e+00> : vector<4x8x8xf32>
    %82 = tpu.matmul %81, %59, %cst_24 {dimension_numbers = #tpu.dot_dimension_numbers<[2], [1], [1], [2], [0, 0, 0, 1, 1, 2], [0], [0]>} : vector<4x8x8xf32>, vector<4x8x8xf32>, vector<4x8x8xf32> -> vector<4x8x8xf32>
    "tpu.trace_stop"() : () -> ()
    %c0_25 = arith.constant 0 : index
    %c0_26 = arith.constant 0 : index
    %c0_27 = arith.constant 0 : index
    %83 = vector.load %arg7[%c0_25, %c0_26, %c0_27] : memref<4x8x32xf32, #tpu.memory_space<vmem>>, vector<4x8x32xf32>
    "tpu.trace_start"() <{level = 10 : i32, message = "hrd,hdf->hrf"}> : () -> ()
    %cst_28 = arith.constant dense<0.000000e+00> : vector<4x8x32xf32>
    %84 = tpu.matmul %82, %83, %cst_28 {dimension_numbers = #tpu.dot_dimension_numbers<[2], [1], [1], [2], [0, 0, 0, 1, 1, 2], [0], [0]>} : vector<4x8x8xf32>, vector<4x8x32xf32>, vector<4x8x32xf32> -> vector<4x8x32xf32>
    "tpu.trace_stop"() : () -> ()
    %cst_29 = arith.constant dense<0.000000e+00> : vector<8x32xf32>
    %85 = vector.multi_reduction <add>, %84, %cst_29 [0] : vector<4x8x32xf32> to vector<8x32xf32>
    %c0_30 = arith.constant 0 : index
    %c0_31 = arith.constant 0 : index
    %86 = vector.load %arg8[%c0_30, %c0_31] : memref<1x32xf32, #tpu.memory_space<vmem>>, vector<1x32xf32>
    %87 = vector.broadcast %86 : vector<1x32xf32> to vector<8x32xf32>
    %88 = arith.addf %85, %87 : vector<8x32xf32>
    %89 = vector.shape_cast %88 : vector<8x32xf32> to vector<1x8x32xf32>
    %c0_32 = arith.constant 0 : index
    %c0_33 = arith.constant 0 : index
    %c0_34 = arith.constant 0 : index
    %90 = vector.load %arg9[%c0_32, %c0_33, %c0_34] : memref<1x8x32xf32, #tpu.memory_space<vmem>>, vector<1x8x32xf32>
    tpu.vector_store %arg9[%c0_32, %c0_33, %c0_34], %89 {strides = array<i32>} : memref<1x8x32xf32, #tpu.memory_space<vmem>>, vector<1x8x32xf32>,
    return
  }
  func.func @transform_0(%arg0: i32) -> (i32, i32, i32) {
    %c0_i32 = arith.constant 0 : i32
    %c0_i32_0 = arith.constant 0 : i32
    %c0_i32_1 = arith.constant 0 : i32
    return %arg0, %c0_i32, %c0_i32_0 : i32, i32, i32
  }
  func.func @transform_1(%arg0: i32) -> (i32, i32, i32) {
    %c0_i32 = arith.constant 0 : i32
    %c0_i32_0 = arith.constant 0 : i32
    %c0_i32_1 = arith.constant 0 : i32
    return %arg0, %c0_i32, %c0_i32_0 : i32, i32, i32
  }
  func.func @transform_2(%arg0: i32) -> (i32, i32) {
    %c0_i32 = arith.constant 0 : i32
    %c0_i32_0 = arith.constant 0 : i32
    %c0_i32_1 = arith.constant 0 : i32
    return %c0_i32, %c0_i32_0 : i32, i32
  }
  func.func @transform_3(%arg0: i32) -> (i32, i32) {
    %c0_i32 = arith.constant 0 : i32
    %c0_i32_0 = arith.constant 0 : i32
    %c0_i32_1 = arith.constant 0 : i32
    return %c0_i32, %c0_i32_0 : i32, i32
  }
  func.func @transform_4(%arg0: i32) -> (i32, i32) {
    %c0_i32 = arith.constant 0 : i32
    %c0_i32_0 = arith.constant 0 : i32
    %c0_i32_1 = arith.constant 0 : i32
    return %c0_i32, %c0_i32_0 : i32, i32
  }
  func.func @transform_5(%arg0: i32) -> (i32, i32) {
    %c0_i32 = arith.constant 0 : i32
    %c0_i32_0 = arith.constant 0 : i32
    %c0_i32_1 = arith.constant 0 : i32
    return %c0_i32, %c0_i32_0 : i32, i32
  }
  func.func @transform_6(%arg0: i32) -> (i32, i32, i32) {
    %c0_i32 = arith.constant 0 : i32
    %c0_i32_0 = arith.constant 0 : i32
    %c0_i32_1 = arith.constant 0 : i32
    %c0_i32_2 = arith.constant 0 : i32
    return %c0_i32, %c0_i32_0, %c0_i32_1 : i32, i32, i32
  }
  func.func @transform_7(%arg0: i32) -> (i32, i32) {
    %c0_i32 = arith.constant 0 : i32
    %c0_i32_0 = arith.constant 0 : i32
    %c0_i32_1 = arith.constant 0 : i32
    return %c0_i32, %c0_i32_0 : i32, i32
  }
  func.func @transform_8(%arg0: i32) -> (i32, i32, i32) {
    %c0_i32 = arith.constant 0 : i32
    %c0_i32_0 = arith.constant 0 : i32
    %c0_i32_1 = arith.constant 0 : i32
    return %arg0, %c0_i32, %c0_i32_0 : i32, i32, i32
  }
}

</mosaic_0001>

<llo_original>
// kernel: tpu_custom_call.1
$region0: #{tpu_custom_call.1}
  #allocation0 [shape = 'u32[]', space=smem, size = 0x4, offset = 0x4, fixed_abs, tag = 'smem constant byte address 0x4 - core index']
  #allocation1 [shape = 'u32[144,128]{1,0:T(1,128)}', space=vmem, size = 0x12000, scoped, tag = 'internal scratch']
  %s0 = inlined_call_operand.hbm [shape: f32[2,8,32], index: 0, kind: input, shape index: {}]
  %s1 = inlined_call_operand.vmem [shape: f32[2,1,8], index: 1, kind: input, shape index: {}]
  %s2 = inlined_call_operand.vmem [shape: f32[1,32], index: 2, kind: input, shape index: {}]
  %s3 = inlined_call_operand.vmem [shape: f32[1,32], index: 3, kind: input, shape index: {}]
  %s4 = inlined_call_operand.hbm [shape: f32[32,96], index: 4, kind: input, shape index: {}]
  %s5 = inlined_call_operand.vmem [shape: f32[1,96], index: 5, kind: input, shape index: {}]
  %s6 = inlined_call_operand.hbm [shape: f32[4,8,32], index: 6, kind: input, shape index: {}]
  %s7 = inlined_call_operand.vmem [shape: f32[1,32], index: 7, kind: input, shape index: {}]
  %s8 = inlined_call_operand.hbm [shape: f32[2,8,32], index: 8, kind: output, shape index: {}]
  %s9 = sld [smem:[#allocation0]]
  $region77: #{tpu_custom_call.1} parent=0
    _
  %s11 = ssub.s32 1, %s9
  %s12 = scalar_select 0, %s11, %s9
  $region1: #{tpu_custom_call.1} parent=0
    #allocation2 [shape = 'u8[8192]{0}', space=vmem, size = 0x2000, scoped, tag = 'input window, operand 0']
    #allocation3 [shape = 's32[2]{0}', space=sflag, size = 0x8, scoped, tag = 'scoped memory for tpu_custom_call.1']
    #allocation4 [shape = 's32[2]{0}', space=sflag, size = 0x8, scoped, tag = 'scoped memory for tpu_custom_call.1']
    #allocation5 [shape = 'u8[16384]{0}', space=vmem, size = 0x4000, scoped, tag = 'input window, operand 4, single buffered']
    #allocation6 [shape = 's32[1]{0}', space=sflag, size = 0x4, scoped, tag = 'scoped memory for tpu_custom_call.1']
    #allocation7 [shape = 'u8[16384]{0}', space=vmem, size = 0x4000, scoped, tag = 'input window, operand 6, single buffered']
    #allocation8 [shape = 'u8[8192]{0}', space=vmem, size = 0x2000, scoped, tag = 'output window, operand 0']
    %13 = vsyncpa [#allocation3], 0
    %s14 = scalar_lea.sflag [#allocation3], 1
    %15 = vsyncpa %s14, 0
    %16 = vsyncpa [#allocation6], 0
    %17 = vsyncpa [#allocation4], 0
    %s18 = scalar_lea.sflag [#allocation4], 1
    %19 = vsyncpa %s18, 0
    loop: start=0, step=1, limit=4
    $region2: #{tpu_custom_call.1} parent=1 // loop_pre_header
      _
    $region3: #{tpu_custom_call.1} parent=1 // loop_header
      %s21 = sphi 0, %s25
      %p22 = scmp.ge.s32.totalorder %s21, 4
      %s31 = sphi 0, %s33
      %s34 = sphi 0, %s31
      %s35 = sphi 0, %s34
      %s51 = sphi 0, %s35
      %s57 = sphi 0, %s59
      %s60 = sphi 0, %s57
      %s61 = sphi 0, %s60
      %s77 = sphi 0, %s61
      %s81 = sphi 0, %s81
      %s83 = sphi 0, %s81
      %s84 = sphi 0, %s83
      %s98 = sphi 0, %s84
      %s102 = sphi 0, %s102
      %s104 = sphi 0, %s102
      %s105 = sphi 0, %s104
      %s119 = sphi 0, %s105
      %s123 = sphi 0, %s123
      %s125 = sphi 0, %s123
      %s126 = sphi 0, %s125
      %s140 = sphi 0, %s126
      %s144 = sphi 0, %s144
      %s146 = sphi 0, %s144
      %s147 = sphi 0, %s146
      %s161 = sphi 0, %s147
      %s165 = sphi 0, %s165
      %s167 = sphi 0, %s165
      %s168 = sphi 0, %s167
      %s182 = sphi 0, %s168
      %s186 = sphi 0, %s186
      %s188 = sphi 0, %s186
      %s189 = sphi 0, %s188
      %s203 = sphi 0, %s189
      %s209 = sphi 0, %s211
      %s212 = sphi 0, %s209
      %s213 = sphi 0, %s212
      %s229 = sphi 0, %s213
    $region4: #{tpu_custom_call.1} parent=1 // loop_header_branch
      %24 = sbr.rel (%p22) target = $region8
    $region5: #{tpu_custom_call.1} parent=1 // loop_body
      %s26 = ssub.s32 %s21, 1
      %s27 = ssub.s32 %s21, 2
      %s28 = sadd.s32 %s21, 1
      %s29 = ssub.s32 %s21, %s28
      %p30 = scmp.eq.s32.totalorder %s29, 0
      %s32 = sadd.s32 %s31, 1
      %s33 = scalar_select %p30, %s31, %s32
      %p36 = pneg %p30
      %p37 = scmp.eq.s32.totalorder %s21, 1
      %p38 = por %p36, %p37
      %p39 = scmp.ne.s32.totalorder %s31, %s34
      %p40 = scmp.eq.s32.totalorder %s21, 0
      %p41 = por %p39, %p40
      %p42 = scmp.ne.s32.totalorder %s31, %s34
      %p43 = scmp.eq.s32.totalorder %s26, 1
      %p44 = por %p42, %p43
      %p45 = scmp.ne.s32.totalorder %s34, %s35
      %p46 = scmp.eq.s32.totalorder %s26, 0
      %p47 = por %p45, %p46
      %p48 = scmp.ne.s32.totalorder %s34, %s35
      %p49 = scmp.eq.s32.totalorder %s27, 1
      %p50 = por %p48, %p49
      %p52 = scmp.ne.s32.totalorder %s35, %s51
      %p53 = scmp.eq.s32.totalorder %s27, 0
      %p54 = por %p52, %p53
      %s55 = ssub.s32 %s21, %s28
      %p56 = scmp.eq.s32.totalorder %s55, 0
      %s58 = sadd.s32 %s57, 1
      %s59 = scalar_select %p56, %s57, %s58
      %p62 = pneg %p56
      %p63 = scmp.eq.s32.totalorder %s21, 1
      %p64 = por %p62, %p63
      %p65 = scmp.ne.s32.totalorder %s57, %s60
      %p66 = scmp.eq.s32.totalorder %s21, 0
      %p67 = por %p65, %p66
      %p68 = scmp.ne.s32.totalorder %s57, %s60
      %p69 = scmp.eq.s32.totalorder %s26, 1
      %p70 = por %p68, %p69
      %p71 = scmp.ne.s32.totalorder %s60, %s61
      %p72 = scmp.eq.s32.totalorder %s26, 0
      %p73 = por %p71, %p72
      %p74 = scmp.ne.s32.totalorder %s60, %s61
      %p75 = scmp.eq.s32.totalorder %s27, 1
      %p76 = por %p74, %p75
      %p78 = scmp.ne.s32.totalorder %s61, %s77
      %p79 = scmp.eq.s32.totalorder %s27, 0
      %p80 = por %p78, %p79
      %s82 = sadd.s32 %s81, 1
      %p85 = scmp.eq.s32.totalorder %s21, 1
      %p86 = scmp.ne.s32.totalorder %s81, %s83
      %p87 = scmp.eq.s32.totalorder %s21, 0
      %p88 = por %p86, %p87
      %p89 = scmp.ne.s32.totalorder %s81, %s83
      %p90 = scmp.eq.s32.totalorder %s26, 1
      %p91 = por %p89, %p90
      %p92 = scmp.ne.s32.totalorder %s83, %s84
      %p93 = scmp.eq.s32.totalorder %s26, 0
      %p94 = por %p92, %p93
      %p95 = scmp.ne.s32.totalorder %s83, %s84
      %p96 = scmp.eq.s32.totalorder %s27, 1
      %p97 = por %p95, %p96
      %p99 = scmp.ne.s32.totalorder %s84, %s98
      %p100 = scmp.eq.s32.totalorder %s27, 0
      %p101 = por %p99, %p100
      %s103 = sadd.s32 %s102, 1
      %p106 = scmp.eq.s32.totalorder %s21, 1
      %p107 = scmp.ne.s32.totalorder %s102, %s104
      %p108 = scmp.eq.s32.totalorder %s21, 0
      %p109 = por %p107, %p108
      %p110 = scmp.ne.s32.totalorder %s102, %s104
      %p111 = scmp.eq.s32.totalorder %s26, 1
      %p112 = por %p110, %p111
      %p113 = scmp.ne.s32.totalorder %s104, %s105
      %p114 = scmp.eq.s32.totalorder %s26, 0
      %p115 = por %p113, %p114
      %p116 = scmp.ne.s32.totalorder %s104, %s105
      %p117 = scmp.eq.s32.totalorder %s27, 1
      %p118 = por %p116, %p117
      %p120 = scmp.ne.s32.totalorder %s105, %s119
      %p121 = scmp.eq.s32.totalorder %s27, 0
      %p122 = por %p120, %p121
      %s124 = sadd.s32 %s123, 1
      %p127 = scmp.eq.s32.totalorder %s21, 1
      %p128 = scmp.ne.s32.totalorder %s123, %s125
      %p129 = scmp.eq.s32.totalorder %s21, 0
      %p130 = por %p128, %p129
      %p131 = scmp.ne.s32.totalorder %s123, %s125
      %p132 = scmp.eq.s32.totalorder %s26, 1
      %p133 = por %p131, %p132
      %p134 = scmp.ne.s32.totalorder %s125, %s126
      %p135 = scmp.eq.s32.totalorder %s26, 0
      %p136 = por %p134, %p135
      %p137 = scmp.ne.s32.totalorder %s125, %s126
      %p138 = scmp.eq.s32.totalorder %s27, 1
      %p139 = por %p137, %p138
      %p141 = scmp.ne.s32.totalorder %s126, %s140
      %p142 = scmp.eq.s32.totalorder %s27, 0
      %p143 = por %p141, %p142
      %s145 = sadd.s32 %s144, 1
      %p148 = scmp.eq.s32.totalorder %s21, 1
      %p149 = scmp.ne.s32.totalorder %s144, %s146
      %p150 = scmp.eq.s32.totalorder %s21, 0
      %p151 = por %p149, %p150
      %p152 = scmp.ne.s32.totalorder %s144, %s146
      %p153 = scmp.eq.s32.totalorder %s26, 1
      %p154 = por %p152, %p153
      %p155 = scmp.ne.s32.totalorder %s146, %s147
      %p156 = scmp.eq.s32.totalorder %s26, 0
      %p157 = por %p155, %p156
      %p158 = scmp.ne.s32.totalorder %s146, %s147
      %p159 = scmp.eq.s32.totalorder %s27, 1
      %p160 = por %p158, %p159
      %p162 = scmp.ne.s32.totalorder %s147, %s161
      %p163 = scmp.eq.s32.totalorder %s27, 0
      %p164 = por %p162, %p163
      %s166 = sadd.s32 %s165, 1
      %p169 = scmp.eq.s32.totalorder %s21, 1
      %p170 = scmp.ne.s32.totalorder %s165, %s167
      %p171 = scmp.eq.s32.totalorder %s21, 0
      %p172 = por %p170, %p171
      %p173 = scmp.ne.s32.totalorder %s165, %s167
      %p174 = scmp.eq.s32.totalorder %s26, 1
      %p175 = por %p173, %p174
      %p176 = scmp.ne.s32.totalorder %s167, %s168
      %p177 = scmp.eq.s32.totalorder %s26, 0
      %p178 = por %p176, %p177
      %p179 = scmp.ne.s32.totalorder %s167, %s168
      %p180 = scmp.eq.s32.totalorder %s27, 1
      %p181 = por %p179, %p180
      %p183 = scmp.ne.s32.totalorder %s168, %s182
      %p184 = scmp.eq.s32.totalorder %s27, 0
      %p185 = por %p183, %p184
      %s187 = sadd.s32 %s186, 1
      %p190 = scmp.eq.s32.totalorder %s21, 1
      %p191 = scmp.ne.s32.totalorder %s186, %s188
      %p192 = scmp.eq.s32.totalorder %s21, 0
      %p193 = por %p191, %p192
      %p194 = scmp.ne.s32.totalorder %s186, %s188
      %p195 = scmp.eq.s32.totalorder %s26, 1
      %p196 = por %p194, %p195
      %p197 = scmp.ne.s32.totalorder %s188, %s189
      %p198 = scmp.eq.s32.totalorder %s26, 0
      %p199 = por %p197, %p198
      %p200 = scmp.ne.s32.totalorder %s188, %s189
      %p201 = scmp.eq.s32.totalorder %s27, 1
      %p202 = por %p200, %p201
      %p204 = scmp.ne.s32.totalorder %s189, %s203
      %p205 = scmp.eq.s32.totalorder %s27, 0
      %p206 = por %p204, %p205
      %s207 = ssub.s32 %s21, %s28
      %p208 = scmp.eq.s32.totalorder %s207, 0
      %s210 = sadd.s32 %s209, 1
      %s211 = scalar_select %p208, %s209, %s210
      %p214 = pneg %p208
      %p215 = scmp.eq.s32.totalorder %s21, 1
      %p216 = por %p214, %p215
      %p217 = scmp.ne.s32.totalorder %s209, %s212
      %p218 = scmp.eq.s32.totalorder %s21, 0
      %p219 = por %p217, %p218
      %p220 = scmp.ne.s32.totalorder %s209, %s212
      %p221 = scmp.eq.s32.totalorder %s26, 1
      %p222 = por %p220, %p221
      %p223 = scmp.ne.s32.totalorder %s212, %s213
      %p224 = scmp.eq.s32.totalorder %s26, 0
      %p225 = por %p223, %p224
      %p226 = scmp.ne.s32.totalorder %s212, %s213
      %p227 = scmp.eq.s32.totalorder %s27, 1
      %p228 = por %p226, %p227
      %p230 = scmp.ne.s32.totalorder %s213, %s229
      %p231 = scmp.eq.s32.totalorder %s27, 0
      %p232 = por %p230, %p231
      %p233 = scmp.le.s32.totalorder 1, %s21
      %p234 = scmp.lt.s32.totalorder %s21, 3
      %p235 = pnand %p233, %p234
      %p236 = pneg %p235
      // Predicated region
      $region9: #{tpu_custom_call.1} parent=5 // pred_check
        _
      $region10: #{tpu_custom_call.1} parent=5 // pred_check_branch
        %238 = sbr.rel (%p235) target = $region12
      $region11: #{tpu_custom_call.1} parent=5 // pred_region
        %s239 = ssub.s32 %s21, 1
        // Predicated region
        $region13: #{tpu_custom_call.1} parent=11 // pred_check
          %p240 = pneg %p94
        $region14: #{tpu_custom_call.1} parent=11 // pred_check_branch
          %242 = sbr.rel (%p240) target = $region16
        $region15: #{tpu_custom_call.1} parent=11 // pred_region
          _
        $region16: #{tpu_custom_call.1} parent=11 // pred_fallthru
          _
        // Predicated region
        $region17: #{tpu_custom_call.1} parent=11 // pred_check
          %p243 = pneg %p115
        $region18: #{tpu_custom_call.1} parent=11 // pred_check_branch
          %245 = sbr.rel (%p243) target = $region20
        $region19: #{tpu_custom_call.1} parent=11 // pred_region
          _
        $region20: #{tpu_custom_call.1} parent=11 // pred_fallthru
          _
        // Predicated region
        $region21: #{tpu_custom_call.1} parent=11 // pred_check
          %p246 = pneg %p136
        $region22: #{tpu_custom_call.1} parent=11 // pred_check_branch
          %248 = sbr.rel (%p246) target = $region24
        $region23: #{tpu_custom_call.1} parent=11 // pred_region
          %s250 = ssub.s32 512, 512
          %251 = vsyncadd [#allocation6], %s250
          %s252 = sshll.u32 [#allocation5], 4
          %s253 = int_to_ptr.vmem [resolvable:$true] %s252
          %258 = dma.hbm_to_vmem [thread:$0]  %s4, 512, %s253, [#allocation6], 128, 128, 8
        $region24: #{tpu_custom_call.1} parent=11 // pred_fallthru
          _
        // Predicated region
        $region25: #{tpu_custom_call.1} parent=11 // pred_check
          %p259 = pneg %p157
        $region26: #{tpu_custom_call.1} parent=11 // pred_check_branch
          %261 = sbr.rel (%p259) target = $region28
        $region27: #{tpu_custom_call.1} parent=11 // pred_region
          _
        $region28: #{tpu_custom_call.1} parent=11 // pred_fallthru
          _
        // Predicated region
        $region29: #{tpu_custom_call.1} parent=11 // pred_check
          %p262 = pneg %p178
        $region30: #{tpu_custom_call.1} parent=11 // pred_check_branch
          %264 = sbr.rel (%p262) target = $region32
        $region31: #{tpu_custom_call.1} parent=11 // pred_region
          %s266 = ssub.s32 512, 512
          %267 = vsyncadd [#allocation6], %s266
          %s268 = sshll.u32 [#allocation7], 4
          %s269 = int_to_ptr.vmem [resolvable:$true] %s268
          %274 = dma.hbm_to_vmem [thread:$0]  %s6, 512, %s269, [#allocation6], 128, 128, 8
        $region32: #{tpu_custom_call.1} parent=11 // pred_fallthru
          _
        // Predicated region
        $region33: #{tpu_custom_call.1} parent=11 // pred_check
          %p275 = pneg %p199
        $region34: #{tpu_custom_call.1} parent=11 // pred_check_branch
          %277 = sbr.rel (%p275) target = $region36
        $region35: #{tpu_custom_call.1} parent=11 // pred_region
          _
        $region36: #{tpu_custom_call.1} parent=11 // pred_fallthru
          _
      $region12: #{tpu_custom_call.1} parent=5 // pred_fallthru
        _
      %p278 = scmp.lt.s32.totalorder %s21, 2
      // Predicated region
      $region37: #{tpu_custom_call.1} parent=5 // pred_check
        %p279 = pneg %p278
      $region38: #{tpu_custom_call.1} parent=5 // pred_check_branch
        %281 = sbr.rel (%p279) target = $region40
      $region39: #{tpu_custom_call.1} parent=5 // pred_region
        // Predicated region
        $region41: #{tpu_custom_call.1} parent=39 // pred_check
          %p282 = pneg %p41
        $region42: #{tpu_custom_call.1} parent=39 // pred_check_branch
          %284 = sbr.rel (%p282) target = $region44
        $region43: #{tpu_custom_call.1} parent=39 // pred_region
          %s285 = sand.u32 %s31, 1
          %s286 = scalar_lea.sflag [#allocation3], %s285
          %s287 = sand.u32 %s31, 1
          %s288 = smul.addr %s287, 8
          %s289 = scalar_lea.vmem [#allocation2], %s288
          %s291 = ssub.s32 128, 128
          %292 = vsyncadd %s286, %s291
          %s293 = smul.addr %s21, 128
          %s294 = scalar_lea.hbm %s0, %s293
          %s296 = sshll.u32 %s289, 4
          %s297 = int_to_ptr.vmem [resolvable:$true] %s296
          %299 = dma.hbm_to_vmem [thread:$0]  %s294, 128, %s297, %s286
        $region44: #{tpu_custom_call.1} parent=39 // pred_fallthru
          _
        // Predicated region
        $region45: #{tpu_custom_call.1} parent=39 // pred_check
          %p300 = pneg %p67
        $region46: #{tpu_custom_call.1} parent=39 // pred_check_branch
          %302 = sbr.rel (%p300) target = $region48
        $region47: #{tpu_custom_call.1} parent=39 // pred_region
          %p303 = scmp.lt.s32.totalorder %s21, 1
          %s304 = scalar_select %p303, %s21, 1
          %s305 = scalar_lea.vmem %s1, %s304
        $region48: #{tpu_custom_call.1} parent=39 // pred_fallthru
          _
      $region40: #{tpu_custom_call.1} parent=5 // pred_fallthru
        _
      %p306 = scmp.le.s32.totalorder 1, %s21
      %p307 = scmp.lt.s32.totalorder %s21, 3
      %p308 = pnand %p306, %p307
      %p309 = pneg %p308
      // Predicated region
      $region49: #{tpu_custom_call.1} parent=5 // pred_check
        _
      $region50: #{tpu_custom_call.1} parent=5 // pred_check_branch
        %311 = sbr.rel (%p308) target = $region52
      $region51: #{tpu_custom_call.1} parent=5 // pred_region
        %s312 = ssub.s32 %s21, 1
        %s313 = sand.u32 %s34, 1
        %s314 = scalar_lea.sflag [#allocation3], %s313
        %s315 = sand.u32 %s34, 1
        %s316 = smul.addr %s315, 8
        %s317 = scalar_lea.vmem [#allocation2], %s316
        // Predicated region
        $region53: #{tpu_custom_call.1} parent=51 // pred_check
          %p318 = pneg %p47
        $region54: #{tpu_custom_call.1} parent=51 // pred_check_branch
          %320 = sbr.rel (%p318) target = $region56
        $region55: #{tpu_custom_call.1} parent=51 // pred_region
          %321 = dma.done %s314, 128
        $region56: #{tpu_custom_call.1} parent=51 // pred_fallthru
          _
        // Predicated region
        $region57: #{tpu_custom_call.1} parent=51 // pred_check
          %p322 = pneg %p136
        $region58: #{tpu_custom_call.1} parent=51 // pred_check_branch
          %324 = sbr.rel (%p322) target = $region60
        $region59: #{tpu_custom_call.1} parent=51 // pred_region
          %325 = dma.done [#allocation6], 512
        $region60: #{tpu_custom_call.1} parent=51 // pred_fallthru
          _
        // Predicated region
        $region61: #{tpu_custom_call.1} parent=51 // pred_check
          %p326 = pneg %p178
        $region62: #{tpu_custom_call.1} parent=51 // pred_check_branch
          %328 = sbr.rel (%p326) target = $region64
        $region63: #{tpu_custom_call.1} parent=51 // pred_region
          %329 = dma.done [#allocation6], 512
        $region64: #{tpu_custom_call.1} parent=51 // pred_fallthru
          _
        %s330 = sand.u32 %s34, 1
        %s331 = scalar_lea.sflag [#allocation3], %s330
        %s332 = sand.u32 %s34, 1
        %s333 = smul.addr %s332, 8
        %s334 = scalar_lea.vmem [#allocation2], %s333
        %p335 = pneg %p47
        %p336 = pneg %p44
        %p337 = scmp.lt.s32.totalorder %s26, 1
        %s338 = scalar_select %p337, %s26, 1
        %s339 = scalar_lea.vmem %s1, %s338
        %p340 = pneg %p73
        %p341 = pneg %p70
        %p342 = pneg %p94
        %p343 = pneg %p91
        %p344 = pneg %p115
        %p345 = pneg %p112
        %p346 = pneg %p136
        %p347 = pneg %p133
        %p348 = pneg %p157
        %p349 = pneg %p154
        %p350 = pneg %p178
        %p351 = pneg %p175
        %p352 = pneg %p199
        %p353 = pneg %p196
        %p354 = pneg %p225
        %p355 = pneg %p222
        %s356 = sand.u32 %s212, 1
        %s357 = scalar_lea.sflag [#allocation4], %s356
        %s358 = sand.u32 %s212, 1
        %s359 = smul.addr %s358, 8
        %s360 = scalar_lea.vmem [#allocation8], %s359
        %p361 = scmp.lt.s32.totalorder %s26, 1
        %s362 = scalar_select %p361, %s26, 1
        %s363 = scalar_lea.vmem %s1, %s362
        %v364 = vld [vmem:[%s317] sm:$0xff]
        %vm365 = vcmask 261120
        %v366 = vsel %vm365, %v364, 0.0
        %367 = vadd.xlane.f32.xlu0 %v366
        %v368 = vpop.xlane.xlu0 %367
        %v369 = vrcp.pop 32.0
        %v370 = vmul.f32 %v368, %v369
        %v371 = vsub.f32 %v364, %v370
        %v372 = vmul.f32 %v371, %v371
        %v373 = vsel %vm365, %v372, 0.0
        %374 = vadd.xlane.f32.xlu0 %v373
        %v375 = vpop.xlane.xlu0 %374
        %v376 = vmul.f32 %v375, %v369
        %v377 = vadd.f32 %v376, 1e-05
        %v378 = vrsqrt.pop %v377
        %v379 = vmul.f32 %v371, %v378
        %v380 = vld [vmem:[%s2] sm:$0x1]
        %v382 = vlaneseq
        %v383 = vshrl.u32 %v382, 7
        %v384 = vsub.s32 0, %v383
        %v385 = vrot.slane %v380, %v384
        %v387 = vmul.f32 %v379, %v385
        %v388 = vld [vmem:[%s3] sm:$0x1]
        %v390 = vlaneseq
        %v391 = vshrl.u32 %v390, 7
        %v392 = vsub.s32 0, %v391
        %v393 = vrot.slane %v388, %v392
        %v395 = vadd.f32 %v387, %v393
        %v396 = vld [vmem:[#allocation5] sm:$0xff]
        %v397 = vld [vmem:[#allocation5 + $0x8] sm:$0xff]
        %v398 = vld [vmem:[#allocation5 + $0x10] sm:$0xff]
        %v399 = vld [vmem:[#allocation5 + $0x18] sm:$0xff]
        %v400 = vld [vmem:[%s5] sm:$0x1]
        %v402 = vlaneseq
        %v403 = vshrl.u32 %v402, 7
        %v404 = vsub.s32 0, %v403
        %v405 = vrot.slane %v400, %v404
        %v408 = vsel %vm365, %v395, 0
        %410 = vmatprep.subr.mxu0 0.0
        %411 = vmatpush1.msra.mxu0 %v396
        %412 = vmatprep.subr.mxu0 0.0
        %413 = vmatpush1.msra.mxu0 %v397
        %414 = vmatprep.subr.mxu0 0.0
        %415 = vmatpush1.msra.mxu0 %v398
        %416 = vmatprep.subr.mxu0 0.0
        %417 = vmatpush1.msra.mxu0 %v399
        %418 = vmatprep.subr.mxu0 0.0
        %419 = vmatpush1.msra.mxu0 0.0
        %420 = vmatprep.subr.mxu0 0.0
        %421 = vmatpush1.msra.mxu0 0.0
        %422 = vmatprep.subr.mxu0 0.0
        %423 = vmatpush1.msra.mxu0 0.0
        %424 = vmatprep.subr.mxu0 0.0
        %425 = vmatpush1.msra.mxu0 0.0
        %426 = vmatprep.subr.mxu0 0.0
        %427 = vmatpush1.msra.mxu0 0.0
        %428 = vmatprep.subr.mxu0 0.0
        %429 = vmatpush1.msra.mxu0 0.0
        %430 = vmatprep.subr.mxu0 0.0
        %431 = vmatpush1.msra.mxu0 0.0
        %432 = vmatprep.subr.mxu0 0.0
        %433 = vmatpush1.msra.mxu0 0.0
        %434 = vmatprep.subr.mxu0 0.0
        %435 = vmatpush1.msra.mxu0 0.0
        %436 = vmatprep.subr.mxu0 0.0
        %437 = vmatpush1.msra.mxu0 0.0
        %438 = vmatprep.subr.mxu0 0.0
        %439 = vmatpush1.msra.mxu0 0.0
        %440 = vmatprep.subr.mxu0 0.0
        %441 = vmatpush1.msra.mxu0 0.0
        %442 = vmatprep.subr.mxu0 0.0
        %443 = vmatpush1.msra.mxu0 0.0
        %444 = vmatprep.subr.mxu0 0.0
        %445 = vmatpush1.msra.mxu0 0.0
        %446 = vmatprep.subr.mxu0 0.0
        %447 = vmatpush1.msra.mxu0 0.0
        %448 = vmatprep.subr.mxu0 0.0
        %449 = vmatpush1.msra.mxu0 0.0
        %450 = vmatprep.subr.mxu0 0.0
        %451 = vmatpush1.msra.mxu0 0.0
        %452 = vmatprep.subr.mxu0 0.0
        %453 = vmatpush1.msra.mxu0 0.0
        %454 = vmatprep.subr.mxu0 0.0
        %455 = vmatpush1.msra.mxu0 0.0
        %456 = vmatprep.subr.mxu0 0.0
        %457 = vmatpush1.msra.mxu0 0.0
        %458 = vmatprep.subr.mxu0 0.0
        %459 = vmatpush1.msra.mxu0 0.0
        %460 = vmatprep.subr.mxu0 0.0
        %461 = vmatpush1.msra.mxu0 0.0
        %462 = vmatprep.subr.mxu0 0.0
        %463 = vmatpush1.msra.mxu0 0.0
        %464 = vmatprep.subr.mxu0 0.0
        %465 = vmatpush1.msra.mxu0 0.0
        %466 = vmatprep.subr.mxu0 0.0
        %467 = vmatpush1.msra.mxu0 0.0
        %468 = vmatprep.subr.mxu0 0.0
        %469 = vmatpush1.msra.mxu0 0.0
        %470 = vmatprep.subr.mxu0 0.0
        %471 = vmatpush1.msra.mxu0 0.0
        %472 = vmatprep.subr.mxu0 0.0
        %473 = vmatpush1.msra.mxu0 0.0
        %474 = vmatprep.mubr.f32.mxu0 0.0
        %475 = vmatmul.mubr.f32.gmra.mrb[0].mxu0 %v408
        %v476 = vpop.f32.mrb[0].mxu0
        %v477 = vadd.f32 %v405, %v476
        %v478 = vpop.f32.mrb[0].mxu0
        %479 = vdwg.mxu0
        %481 = vrot.lane.b32.xlu0 %v477, 120
        %v482 = vpop.permute.xlu0 %481
        %484 = vrot.lane.b32.xlu0 %v477, 112
        %v485 = vpop.permute.xlu0 %484
        %487 = vrot.lane.b32.xlu0 %v477, 104
        %v488 = vpop.permute.xlu0 %487
        %v490 = vmul.f32 %v477, 0.35355338
        %v491 = vmul.f32 %v482, 0.35355338
        %v492 = vmul.f32 %v485, 0.35355338
        %v493 = vmul.f32 %v488, 0.35355338
        %494 = vrot.lane.b32.xlu0 %v477, 96
        %v495 = vpop.permute.xlu0 %494
        %vm496 = vcmask 64512
        %v498 = vsel %vm496, %v490, 0
        %v500 = vsel %vm496, %v495, 0
        %502 = vmatprep.subr.mxu0 0.0
        %503 = vmatpush1.xpose.msra.mxu0 %v500
        %504 = vmatprep.subr.mxu0 0.0
        %505 = vmatpush1.xpose.msra.mxu0 0.0
        %506 = vmatprep.subr.mxu0 0.0
        %507 = vmatpush1.xpose.msra.mxu0 0.0
        %508 = vmatprep.subr.mxu0 0.0
        %509 = vmatpush1.xpose.msra.mxu0 0.0
        %510 = vmatprep.subr.mxu0 0.0
        %511 = vmatpush1.xpose.msra.mxu0 0.0
        %512 = vmatprep.subr.mxu0 0.0
        %513 = vmatpush1.xpose.msra.mxu0 0.0
        %514 = vmatprep.subr.mxu0 0.0
        %515 = vmatpush1.xpose.msra.mxu0 0.0
        %516 = vmatprep.subr.mxu0 0.0
        %517 = vmatpush1.xpose.msra.mxu0 0.0
        %518 = vmatprep.subr.mxu0 0.0
        %519 = vmatpush1.xpose.msra.mxu0 0.0
        %520 = vmatprep.subr.mxu0 0.0
        %521 = vmatpush1.xpose.msra.mxu0 0.0
        %522 = vmatprep.subr.mxu0 0.0
        %523 = vmatpush1.xpose.msra.mxu0 0.0
        %524 = vmatprep.subr.mxu0 0.0
        %525 = vmatpush1.xpose.msra.mxu0 0.0
        %526 = vmatprep.subr.mxu0 0.0
        %527 = vmatpush1.xpose.msra.mxu0 0.0
        %528 = vmatprep.subr.mxu0 0.0
        %529 = vmatpush1.xpose.msra.mxu0 0.0
        %530 = vmatprep.subr.mxu0 0.0
        %531 = vmatpush1.xpose.msra.mxu0 0.0
        %532 = vmatprep.subr.mxu0 0.0
        %533 = vmatpush1.xpose.msra.mxu0 0.0
        %534 = vmatprep.subr.mxu0 0.0
        %535 = vmatpush1.xpose.msra.mxu0 0.0
        %536 = vmatprep.subr.mxu0 0.0
        %537 = vmatpush1.xpose.msra.mxu0 0.0
        %538 = vmatprep.subr.mxu0 0.0
        %539 = vmatpush1.xpose.msra.mxu0 0.0
        %540 = vmatprep.subr.mxu0 0.0
        %541 = vmatpush1.xpose.msra.mxu0 0.0
        %542 = vmatprep.subr.mxu0 0.0
        %543 = vmatpush1.xpose.msra.mxu0 0.0
        %544 = vmatprep.subr.mxu0 0.0
        %545 = vmatpush1.xpose.msra.mxu0 0.0
        %546 = vmatprep.subr.mxu0 0.0
        %547 = vmatpush1.xpose.msra.mxu0 0.0
        %548 = vmatprep.subr.mxu0 0.0
        %549 = vmatpush1.xpose.msra.mxu0 0.0
        %550 = vmatprep.subr.mxu0 0.0
        %551 = vmatpush1.xpose.msra.mxu0 0.0
        %552 = vmatprep.subr.mxu0 0.0
        %553 = vmatpush1.xpose.msra.mxu0 0.0
        %554 = vmatprep.subr.mxu0 0.0
        %555 = vmatpush1.xpose.msra.mxu0 0.0
        %556 = vmatprep.subr.mxu0 0.0
        %557 = vmatpush1.xpose.msra.mxu0 0.0
        %558 = vmatprep.subr.mxu0 0.0
        %559 = vmatpush1.xpose.msra.mxu0 0.0
        %560 = vmatprep.subr.mxu0 0.0
        %561 = vmatpush1.xpose.msra.mxu0 0.0
        %562 = vmatprep.subr.mxu0 0.0
        %563 = vmatpush1.xpose.msra.mxu0 0.0
        %564 = vmatprep.subr.mxu0 0.0
        %565 = vmatpush1.xpose.msra.mxu0 0.0
        %566 = vmatprep.mubr.f32.mxu0 0.0
        %567 = vmatmul.mubr.f32.gmra.mrb[0].mxu0 %v498
        %v568 = vpop.f32.mrb[0].mxu0
        %v569 = vadd.f32 0.0, %v568
        %v570 = vpop.f32.mrb[0].mxu0
        %571 = vdwg.mxu0
        %572 = vrot.lane.b32.xlu0 %v482, 96
        %v573 = vpop.permute.xlu0 %572
        %v575 = vsel %vm496, %v491, 0
        %v577 = vsel %vm496, %v573, 0
        %579 = vmatprep.subr.mxu0 0.0
        %580 = vmatpush1.xpose.msra.mxu0 %v577
        %581 = vmatprep.subr.mxu0 0.0
        %582 = vmatpush1.xpose.msra.mxu0 0.0
        %583 = vmatprep.subr.mxu0 0.0
        %584 = vmatpush1.xpose.msra.mxu0 0.0
        %585 = vmatprep.subr.mxu0 0.0
        %586 = vmatpush1.xpose.msra.mxu0 0.0
        %587 = vmatprep.subr.mxu0 0.0
        %588 = vmatpush1.xpose.msra.mxu0 0.0
        %589 = vmatprep.subr.mxu0 0.0
        %590 = vmatpush1.xpose.msra.mxu0 0.0
        %591 = vmatprep.subr.mxu0 0.0
        %592 = vmatpush1.xpose.msra.mxu0 0.0
        %593 = vmatprep.subr.mxu0 0.0
        %594 = vmatpush1.xpose.msra.mxu0 0.0
        %595 = vmatprep.subr.mxu0 0.0
        %596 = vmatpush1.xpose.msra.mxu0 0.0
        %597 = vmatprep.subr.mxu0 0.0
        %598 = vmatpush1.xpose.msra.mxu0 0.0
        %599 = vmatprep.subr.mxu0 0.0
        %600 = vmatpush1.xpose.msra.mxu0 0.0
        %601 = vmatprep.subr.mxu0 0.0
        %602 = vmatpush1.xpose.msra.mxu0 0.0
        %603 = vmatprep.subr.mxu0 0.0
        %604 = vmatpush1.xpose.msra.mxu0 0.0
        %605 = vmatprep.subr.mxu0 0.0
        %606 = vmatpush1.xpose.msra.mxu0 0.0
        %607 = vmatprep.subr.mxu0 0.0
        %608 = vmatpush1.xpose.msra.mxu0 0.0
        %609 = vmatprep.subr.mxu0 0.0
        %610 = vmatpush1.xpose.msra.mxu0 0.0
        %611 = vmatprep.subr.mxu0 0.0
        %612 = vmatpush1.xpose.msra.mxu0 0.0
        %613 = vmatprep.subr.mxu0 0.0
        %614 = vmatpush1.xpose.msra.mxu0 0.0
        %615 = vmatprep.subr.mxu0 0.0
        %616 = vmatpush1.xpose.msra.mxu0 0.0
        %617 = vmatprep.subr.mxu0 0.0
        %618 = vmatpush1.xpose.msra.mxu0 0.0
        %619 = vmatprep.subr.mxu0 0.0
        %620 = vmatpush1.xpose.msra.mxu0 0.0
        %621 = vmatprep.subr.mxu0 0.0
        %622 = vmatpush1.xpose.msra.mxu0 0.0
        %623 = vmatprep.subr.mxu0 0.0
        %624 = vmatpush1.xpose.msra.mxu0 0.0
        %625 = vmatprep.subr.mxu0 0.0
        %626 = vmatpush1.xpose.msra.mxu0 0.0
        %627 = vmatprep.subr.mxu0 0.0
        %628 = vmatpush1.xpose.msra.mxu0 0.0
        %629 = vmatprep.subr.mxu0 0.0
        %630 = vmatpush1.xpose.msra.mxu0 0.0
        %631 = vmatprep.subr.mxu0 0.0
        %632 = vmatpush1.xpose.msra.mxu0 0.0
        %633 = vmatprep.subr.mxu0 0.0
        %634 = vmatpush1.xpose.msra.mxu0 0.0
        %635 = vmatprep.subr.mxu0 0.0
        %636 = vmatpush1.xpose.msra.mxu0 0.0
        %637 = vmatprep.subr.mxu0 0.0
        %638 = vmatpush1.xpose.msra.mxu0 0.0
        %639 = vmatprep.subr.mxu0 0.0
        %640 = vmatpush1.xpose.msra.mxu0 0.0
        %641 = vmatprep.subr.mxu0 0.0
        %642 = vmatpush1.xpose.msra.mxu0 0.0
        %643 = vmatprep.mubr.f32.mxu0 0.0
        %644 = vmatmul.mubr.f32.gmra.mrb[0].mxu0 %v575
        %v645 = vpop.f32.mrb[0].mxu0
        %v646 = vadd.f32 0.0, %v645
        %v647 = vpop.f32.mrb[0].mxu0
        %648 = vdwg.mxu0
        %649 = vrot.lane.b32.xlu0 %v485, 96
        %v650 = vpop.permute.xlu0 %649
        %v652 = vsel %vm496, %v492, 0
        %v654 = vsel %vm496, %v650, 0
        %656 = vmatprep.subr.mxu0 0.0
        %657 = vmatpush1.xpose.msra.mxu0 %v654
        %658 = vmatprep.subr.mxu0 0.0
        %659 = vmatpush1.xpose.msra.mxu0 0.0
        %660 = vmatprep.subr.mxu0 0.0
        %661 = vmatpush1.xpose.msra.mxu0 0.0
        %662 = vmatprep.subr.mxu0 0.0
        %663 = vmatpush1.xpose.msra.mxu0 0.0
        %664 = vmatprep.subr.mxu0 0.0
        %665 = vmatpush1.xpose.msra.mxu0 0.0
        %666 = vmatprep.subr.mxu0 0.0
        %667 = vmatpush1.xpose.msra.mxu0 0.0
        %668 = vmatprep.subr.mxu0 0.0
        %669 = vmatpush1.xpose.msra.mxu0 0.0
        %670 = vmatprep.subr.mxu0 0.0
        %671 = vmatpush1.xpose.msra.mxu0 0.0
        %672 = vmatprep.subr.mxu0 0.0
        %673 = vmatpush1.xpose.msra.mxu0 0.0
        %674 = vmatprep.subr.mxu0 0.0
        %675 = vmatpush1.xpose.msra.mxu0 0.0
        %676 = vmatprep.subr.mxu0 0.0
        %677 = vmatpush1.xpose.msra.mxu0 0.0
        %678 = vmatprep.subr.mxu0 0.0
        %679 = vmatpush1.xpose.msra.mxu0 0.0
        %680 = vmatprep.subr.mxu0 0.0
        %681 = vmatpush1.xpose.msra.mxu0 0.0
        %682 = vmatprep.subr.mxu0 0.0
        %683 = vmatpush1.xpose.msra.mxu0 0.0
        %684 = vmatprep.subr.mxu0 0.0
        %685 = vmatpush1.xpose.msra.mxu0 0.0
        %686 = vmatprep.subr.mxu0 0.0
        %687 = vmatpush1.xpose.msra.mxu0 0.0
        %688 = vmatprep.subr.mxu0 0.0
        %689 = vmatpush1.xpose.msra.mxu0 0.0
        %690 = vmatprep.subr.mxu0 0.0
        %691 = vmatpush1.xpose.msra.mxu0 0.0
        %692 = vmatprep.subr.mxu0 0.0
        %693 = vmatpush1.xpose.msra.mxu0 0.0
        %694 = vmatprep.subr.mxu0 0.0
        %695 = vmatpush1.xpose.msra.mxu0 0.0
        %696 = vmatprep.subr.mxu0 0.0
        %697 = vmatpush1.xpose.msra.mxu0 0.0
        %698 = vmatprep.subr.mxu0 0.0
        %699 = vmatpush1.xpose.msra.mxu0 0.0
        %700 = vmatprep.subr.mxu0 0.0
        %701 = vmatpush1.xpose.msra.mxu0 0.0
        %702 = vmatprep.subr.mxu0 0.0
        %703 = vmatpush1.xpose.msra.mxu0 0.0
        %704 = vmatprep.subr.mxu0 0.0
        %705 = vmatpush1.xpose.msra.mxu0 0.0
        %706 = vmatprep.subr.mxu0 0.0
        %707 = vmatpush1.xpose.msra.mxu0 0.0
        %708 = vmatprep.subr.mxu0 0.0
        %709 = vmatpush1.xpose.msra.mxu0 0.0
        %710 = vmatprep.subr.mxu0 0.0
        %711 = vmatpush1.xpose.msra.mxu0 0.0
        %712 = vmatprep.subr.mxu0 0.0
        %713 = vmatpush1.xpose.msra.mxu0 0.0
        %714 = vmatprep.subr.mxu0 0.0
        %715 = vmatpush1.xpose.msra.mxu0 0.0
        %716 = vmatprep.subr.mxu0 0.0
        %717 = vmatpush1.xpose.msra.mxu0 0.0
        %718 = vmatprep.subr.mxu0 0.0
        %719 = vmatpush1.xpose.msra.mxu0 0.0
        %720 = vmatprep.mubr.f32.mxu0 0.0
        %721 = vmatmul.mubr.f32.gmra.mrb[0].mxu0 %v652
        %v722 = vpop.f32.mrb[0].mxu0
        %v723 = vadd.f32 0.0, %v722
        %v724 = vpop.f32.mrb[0].mxu0
        %725 = vdwg.mxu0
        %726 = vrot.lane.b32.xlu0 %v488, 96
        %v727 = vpop.permute.xlu0 %726
        %v729 = vsel %vm496, %v493, 0
        %v731 = vsel %vm496, %v727, 0
        %733 = vmatprep.subr.mxu0 0.0
        %734 = vmatpush1.xpose.msra.mxu0 %v731
        %735 = vmatprep.subr.mxu0 0.0
        %736 = vmatpush1.xpose.msra.mxu0 0.0
        %737 = vmatprep.subr.mxu0 0.0
        %738 = vmatpush1.xpose.msra.mxu0 0.0
        %739 = vmatprep.subr.mxu0 0.0
        %740 = vmatpush1.xpose.msra.mxu0 0.0
        %741 = vmatprep.subr.mxu0 0.0
        %742 = vmatpush1.xpose.msra.mxu0 0.0
        %743 = vmatprep.subr.mxu0 0.0
        %744 = vmatpush1.xpose.msra.mxu0 0.0
        %745 = vmatprep.subr.mxu0 0.0
        %746 = vmatpush1.xpose.msra.mxu0 0.0
        %747 = vmatprep.subr.mxu0 0.0
        %748 = vmatpush1.xpose.msra.mxu0 0.0
        %749 = vmatprep.subr.mxu0 0.0
        %750 = vmatpush1.xpose.msra.mxu0 0.0
        %751 = vmatprep.subr.mxu0 0.0
        %752 = vmatpush1.xpose.msra.mxu0 0.0
        %753 = vmatprep.subr.mxu0 0.0
        %754 = vmatpush1.xpose.msra.mxu0 0.0
        %755 = vmatprep.subr.mxu0 0.0
        %756 = vmatpush1.xpose.msra.mxu0 0.0
        %757 = vmatprep.subr.mxu0 0.0
        %758 = vmatpush1.xpose.msra.mxu0 0.0
        %759 = vmatprep.subr.mxu0 0.0
        %760 = vmatpush1.xpose.msra.mxu0 0.0
        %761 = vmatprep.subr.mxu0 0.0
        %762 = vmatpush1.xpose.msra.mxu0 0.0
        %763 = vmatprep.subr.mxu0 0.0
        %764 = vmatpush1.xpose.msra.mxu0 0.0
        %765 = vmatprep.subr.mxu0 0.0
        %766 = vmatpush1.xpose.msra.mxu0 0.0
        %767 = vmatprep.subr.mxu0 0.0
        %768 = vmatpush1.xpose.msra.mxu0 0.0
        %769 = vmatprep.subr.mxu0 0.0
        %770 = vmatpush1.xpose.msra.mxu0 0.0
        %771 = vmatprep.subr.mxu0 0.0
        %772 = vmatpush1.xpose.msra.mxu0 0.0
        %773 = vmatprep.subr.mxu0 0.0
        %774 = vmatpush1.xpose.msra.mxu0 0.0
        %775 = vmatprep.subr.mxu0 0.0
        %776 = vmatpush1.xpose.msra.mxu0 0.0
        %777 = vmatprep.subr.mxu0 0.0
        %778 = vmatpush1.xpose.msra.mxu0 0.0
        %779 = vmatprep.subr.mxu0 0.0
        %780 = vmatpush1.xpose.msra.mxu0 0.0
        %781 = vmatprep.subr.mxu0 0.0
        %782 = vmatpush1.xpose.msra.mxu0 0.0
        %783 = vmatprep.subr.mxu0 0.0
        %784 = vmatpush1.xpose.msra.mxu0 0.0
        %785 = vmatprep.subr.mxu0 0.0
        %786 = vmatpush1.xpose.msra.mxu0 0.0
        %787 = vmatprep.subr.mxu0 0.0
        %788 = vmatpush1.xpose.msra.mxu0 0.0
        %789 = vmatprep.subr.mxu0 0.0
        %790 = vmatpush1.xpose.msra.mxu0 0.0
        %791 = vmatprep.subr.mxu0 0.0
        %792 = vmatpush1.xpose.msra.mxu0 0.0
        %793 = vmatprep.subr.mxu0 0.0
        %794 = vmatpush1.xpose.msra.mxu0 0.0
        %795 = vmatprep.subr.mxu0 0.0
        %796 = vmatpush1.xpose.msra.mxu0 0.0
        %797 = vmatprep.mubr.f32.mxu0 0.0
        %798 = vmatmul.mubr.f32.gmra.mrb[0].mxu0 %v729
        %v799 = vpop.f32.mrb[0].mxu0
        %v800 = vadd.f32 0.0, %v799
        %v801 = vpop.f32.mrb[0].mxu0
        %802 = vdwg.mxu0
        %v803 = vld [vmem:[%s363] sm:$0x1]
        %v804 = vsel %vm496, %v569, -inf
        %805 = vmax.xlane.f32.xlu0 %v804
        %v806 = vpop.xlane.xlu0 %805
        %v807 = vsel %vm496, %v646, -inf
        %808 = vmax.xlane.f32.xlu0 %v807
        %v809 = vpop.xlane.xlu0 %808
        %v810 = vsel %vm496, %v723, -inf
        %811 = vmax.xlane.f32.xlu0 %v810
        %v812 = vpop.xlane.xlu0 %811
        %v813 = vsel %vm496, %v800, -inf
        %814 = vmax.xlane.f32.xlu0 %v813
        %v815 = vpop.xlane.xlu0 %814
        %v816 = vsub.f32 %v569, %v806
        %v817 = vsub.f32 %v646, %v809
        %v818 = vsub.f32 %v723, %v812
        %v819 = vsub.f32 %v800, %v815
        %v820 = vmul.f32 %v816, 1.442695
        %v821 = vpow.pop %v820
        %v822 = vmul.f32 %v817, 1.442695
        %v823 = vpow.pop %v822
        %v824 = vmul.f32 %v818, 1.442695
        %v825 = vpow.pop %v824
        %v826 = vmul.f32 %v819, 1.442695
        %v827 = vpow.pop %v826
        %v829 = vlaneseq
        %v830 = vshrl.u32 %v829, 7
        %v831 = vsub.s32 0, %v830
        %v832 = vrot.slane %v803, %v831
        %v834 = vmul.f32 %v821, %v832
        %v835 = vmul.f32 %v823, %v832
        %v836 = vmul.f32 %v825, %v832
        %v837 = vmul.f32 %v827, %v832
        %v838 = vsel %vm496, %v834, 0.0
        %839 = vadd.xlane.f32.xlu0 %v838
        %v840 = vpop.xlane.xlu0 %839
        %v841 = vsel %vm496, %v835, 0.0
        %842 = vadd.xlane.f32.xlu0 %v841
        %v843 = vpop.xlane.xlu0 %842
        %v844 = vsel %vm496, %v836, 0.0
        %845 = vadd.xlane.f32.xlu0 %v844
        %v846 = vpop.xlane.xlu0 %845
        %v847 = vsel %vm496, %v837, 0.0
        %848 = vadd.xlane.f32.xlu0 %v847
        %v849 = vpop.xlane.xlu0 %848
        %v850 = vsel %vm496, %v821, 0.0
        %851 = vadd.xlane.f32.xlu0 %v850
        %v852 = vpop.xlane.xlu0 %851
        %v853 = vsel %vm496, %v823, 0.0
        %854 = vadd.xlane.f32.xlu0 %v853
        %v855 = vpop.xlane.xlu0 %854
        %v856 = vsel %vm496, %v825, 0.0
        %857 = vadd.xlane.f32.xlu0 %v856
        %v858 = vpop.xlane.xlu0 %857
        %v859 = vsel %vm496, %v827, 0.0
        %860 = vadd.xlane.f32.xlu0 %v859
        %v861 = vpop.xlane.xlu0 %860
        %v862 = vmul.f32 %v852, 1e-06
        %v863 = vmul.f32 %v855, 1e-06
        %v864 = vmul.f32 %v858, 1e-06
        %v865 = vmul.f32 %v861, 1e-06
        %v866 = vadd.f32 %v840, %v862
        %v867 = vadd.f32 %v843, %v863
        %v868 = vadd.f32 %v846, %v864
        %v869 = vadd.f32 %v849, %v865
        %v870 = vrcp.pop %v866
        %v871 = vmul.f32 %v834, %v870
        %v872 = vrcp.pop %v867
        %v873 = vmul.f32 %v835, %v872
        %v874 = vrcp.pop %v868
        %v875 = vmul.f32 %v836, %v874
        %v876 = vrcp.pop %v869
        %v877 = vmul.f32 %v837, %v876
        %878 = vrot.lane.b32.xlu0 %v477, 64
        %v879 = vpop.permute.xlu0 %878
        %v882 = vsel %vm496, %v871, 0
        %884 = vmatprep.subr.mxu0 0.0
        %885 = vmatpush1.msra.mxu0 %v879
        %886 = vmatprep.subr.mxu0 0.0
        %887 = vmatpush1.msra.mxu0 0.0
        %888 = vmatprep.subr.mxu0 0.0
        %889 = vmatpush1.msra.mxu0 0.0
        %890 = vmatprep.subr.mxu0 0.0
        %891 = vmatpush1.msra.mxu0 0.0
        %892 = vmatprep.subr.mxu0 0.0
        %893 = vmatpush1.msra.mxu0 0.0
        %894 = vmatprep.subr.mxu0 0.0
        %895 = vmatpush1.msra.mxu0 0.0
        %896 = vmatprep.subr.mxu0 0.0
        %897 = vmatpush1.msra.mxu0 0.0
        %898 = vmatprep.subr.mxu0 0.0
        %899 = vmatpush1.msra.mxu0 0.0
        %900 = vmatprep.subr.mxu0 0.0
        %901 = vmatpush1.msra.mxu0 0.0
        %902 = vmatprep.subr.mxu0 0.0
        %903 = vmatpush1.msra.mxu0 0.0
        %904 = vmatprep.subr.mxu0 0.0
        %905 = vmatpush1.msra.mxu0 0.0
        %906 = vmatprep.subr.mxu0 0.0
        %907 = vmatpush1.msra.mxu0 0.0
        %908 = vmatprep.subr.mxu0 0.0
        %909 = vmatpush1.msra.mxu0 0.0
        %910 = vmatprep.subr.mxu0 0.0
        %911 = vmatpush1.msra.mxu0 0.0
        %912 = vmatprep.subr.mxu0 0.0
        %913 = vmatpush1.msra.mxu0 0.0
        %914 = vmatprep.subr.mxu0 0.0
        %915 = vmatpush1.msra.mxu0 0.0
        %916 = vmatprep.subr.mxu0 0.0
        %917 = vmatpush1.msra.mxu0 0.0
        %918 = vmatprep.subr.mxu0 0.0
        %919 = vmatpush1.msra.mxu0 0.0
        %920 = vmatprep.subr.mxu0 0.0
        %921 = vmatpush1.msra.mxu0 0.0
        %922 = vmatprep.subr.mxu0 0.0
        %923 = vmatpush1.msra.mxu0 0.0
        %924 = vmatprep.subr.mxu0 0.0
        %925 = vmatpush1.msra.mxu0 0.0
        %926 = vmatprep.subr.mxu0 0.0
        %927 = vmatpush1.msra.mxu0 0.0
        %928 = vmatprep.subr.mxu0 0.0
        %929 = vmatpush1.msra.mxu0 0.0
        %930 = vmatprep.subr.mxu0 0.0
        %931 = vmatpush1.msra.mxu0 0.0
        %932 = vmatprep.subr.mxu0 0.0
        %933 = vmatpush1.msra.mxu0 0.0
        %934 = vmatprep.subr.mxu0 0.0
        %935 = vmatpush1.msra.mxu0 0.0
        %936 = vmatprep.subr.mxu0 0.0
        %937 = vmatpush1.msra.mxu0 0.0
        %938 = vmatprep.subr.mxu0 0.0
        %939 = vmatpush1.msra.mxu0 0.0
        %940 = vmatprep.subr.mxu0 0.0
        %941 = vmatpush1.msra.mxu0 0.0
        %942 = vmatprep.subr.mxu0 0.0
        %943 = vmatpush1.msra.mxu0 0.0
        %944 = vmatprep.subr.mxu0 0.0
        %945 = vmatpush1.msra.mxu0 0.0
        %946 = vmatprep.subr.mxu0 0.0
        %947 = vmatpush1.msra.mxu0 0.0
        %948 = vmatprep.mubr.f32.mxu0 0.0
        %949 = vmatmul.mubr.f32.gmra.mrb[0].mxu0 %v882
        %v950 = vpop.f32.mrb[0].mxu0
        %v951 = vadd.f32 0.0, %v950
        %v952 = vpop.f32.mrb[0].mxu0
        %953 = vdwg.mxu0
        %954 = vrot.lane.b32.xlu0 %v482, 64
        %v955 = vpop.permute.xlu0 %954
        %v958 = vsel %vm496, %v873, 0
        %960 = vmatprep.subr.mxu0 0.0
        %961 = vmatpush1.msra.mxu0 %v955
        %962 = vmatprep.subr.mxu0 0.0
        %963 = vmatpush1.msra.mxu0 0.0
        %964 = vmatprep.subr.mxu0 0.0
        %965 = vmatpush1.msra.mxu0 0.0
        %966 = vmatprep.subr.mxu0 0.0
        %967 = vmatpush1.msra.mxu0 0.0
        %968 = vmatprep.subr.mxu0 0.0
        %969 = vmatpush1.msra.mxu0 0.0
        %970 = vmatprep.subr.mxu0 0.0
        %971 = vmatpush1.msra.mxu0 0.0
        %972 = vmatprep.subr.mxu0 0.0
        %973 = vmatpush1.msra.mxu0 0.0
        %974 = vmatprep.subr.mxu0 0.0
        %975 = vmatpush1.msra.mxu0 0.0
        %976 = vmatprep.subr.mxu0 0.0
        %977 = vmatpush1.msra.mxu0 0.0
        %978 = vmatprep.subr.mxu0 0.0
        %979 = vmatpush1.msra.mxu0 0.0
        %980 = vmatprep.subr.mxu0 0.0
        %981 = vmatpush1.msra.mxu0 0.0
        %982 = vmatprep.subr.mxu0 0.0
        %983 = vmatpush1.msra.mxu0 0.0
        %984 = vmatprep.subr.mxu0 0.0
        %985 = vmatpush1.msra.mxu0 0.0
        %986 = vmatprep.subr.mxu0 0.0
        %987 = vmatpush1.msra.mxu0 0.0
        %988 = vmatprep.subr.mxu0 0.0
        %989 = vmatpush1.msra.mxu0 0.0
        %990 = vmatprep.subr.mxu0 0.0
        %991 = vmatpush1.msra.mxu0 0.0
        %992 = vmatprep.subr.mxu0 0.0
        %993 = vmatpush1.msra.mxu0 0.0
        %994 = vmatprep.subr.mxu0 0.0
        %995 = vmatpush1.msra.mxu0 0.0
        %996 = vmatprep.subr.mxu0 0.0
        %997 = vmatpush1.msra.mxu0 0.0
        %998 = vmatprep.subr.mxu0 0.0
        %999 = vmatpush1.msra.mxu0 0.0
        %1000 = vmatprep.subr.mxu0 0.0
        %1001 = vmatpush1.msra.mxu0 0.0
        %1002 = vmatprep.subr.mxu0 0.0
        %1003 = vmatpush1.msra.mxu0 0.0
        %1004 = vmatprep.subr.mxu0 0.0
        %1005 = vmatpush1.msra.mxu0 0.0
        %1006 = vmatprep.subr.mxu0 0.0
        %1007 = vmatpush1.msra.mxu0 0.0
        %1008 = vmatprep.subr.mxu0 0.0
        %1009 = vmatpush1.msra.mxu0 0.0
        %1010 = vmatprep.subr.mxu0 0.0
        %1011 = vmatpush1.msra.mxu0 0.0
        %1012 = vmatprep.subr.mxu0 0.0
        %1013 = vmatpush1.msra.mxu0 0.0
        %1014 = vmatprep.subr.mxu0 0.0
        %1015 = vmatpush1.msra.mxu0 0.0
        %1016 = vmatprep.subr.mxu0 0.0
        %1017 = vmatpush1.msra.mxu0 0.0
        %1018 = vmatprep.subr.mxu0 0.0
        %1019 = vmatpush1.msra.mxu0 0.0
        %1020 = vmatprep.subr.mxu0 0.0
        %1021 = vmatpush1.msra.mxu0 0.0
        %1022 = vmatprep.subr.mxu0 0.0
        %1023 = vmatpush1.msra.mxu0 0.0
        %1024 = vmatprep.mubr.f32.mxu0 0.0
        %1025 = vmatmul.mubr.f32.gmra.mrb[0].mxu0 %v958
        %v1026 = vpop.f32.mrb[0].mxu0
        %v1027 = vadd.f32 0.0, %v1026
        %v1028 = vpop.f32.mrb[0].mxu0
        %1029 = vdwg.mxu0
        %1030 = vrot.lane.b32.xlu0 %v485, 64
        %v1031 = vpop.permute.xlu0 %1030
        %v1034 = vsel %vm496, %v875, 0
        %1036 = vmatprep.subr.mxu0 0.0
        %1037 = vmatpush1.msra.mxu0 %v1031
        %1038 = vmatprep.subr.mxu0 0.0
        %1039 = vmatpush1.msra.mxu0 0.0
        %1040 = vmatprep.subr.mxu0 0.0
        %1041 = vmatpush1.msra.mxu0 0.0
        %1042 = vmatprep.subr.mxu0 0.0
        %1043 = vmatpush1.msra.mxu0 0.0
        %1044 = vmatprep.subr.mxu0 0.0
        %1045 = vmatpush1.msra.mxu0 0.0
        %1046 = vmatprep.subr.mxu0 0.0
        %1047 = vmatpush1.msra.mxu0 0.0
        %1048 = vmatprep.subr.mxu0 0.0
        %1049 = vmatpush1.msra.mxu0 0.0
        %1050 = vmatprep.subr.mxu0 0.0
        %1051 = vmatpush1.msra.mxu0 0.0
        %1052 = vmatprep.subr.mxu0 0.0
        %1053 = vmatpush1.msra.mxu0 0.0
        %1054 = vmatprep.subr.mxu0 0.0
        %1055 = vmatpush1.msra.mxu0 0.0
        %1056 = vmatprep.subr.mxu0 0.0
        %1057 = vmatpush1.msra.mxu0 0.0
        %1058 = vmatprep.subr.mxu0 0.0
        %1059 = vmatpush1.msra.mxu0 0.0
        %1060 = vmatprep.subr.mxu0 0.0
        %1061 = vmatpush1.msra.mxu0 0.0
        %1062 = vmatprep.subr.mxu0 0.0
        %1063 = vmatpush1.msra.mxu0 0.0
        %1064 = vmatprep.subr.mxu0 0.0
        %1065 = vmatpush1.msra.mxu0 0.0
        %1066 = vmatprep.subr.mxu0 0.0
        %1067 = vmatpush1.msra.mxu0 0.0
        %1068 = vmatprep.subr.mxu0 0.0
        %1069 = vmatpush1.msra.mxu0 0.0
        %1070 = vmatprep.subr.mxu0 0.0
        %1071 = vmatpush1.msra.mxu0 0.0
        %1072 = vmatprep.subr.mxu0 0.0
        %1073 = vmatpush1.msra.mxu0 0.0
        %1074 = vmatprep.subr.mxu0 0.0
        %1075 = vmatpush1.msra.mxu0 0.0
        %1076 = vmatprep.subr.mxu0 0.0
        %1077 = vmatpush1.msra.mxu0 0.0
        %1078 = vmatprep.subr.mxu0 0.0
        %1079 = vmatpush1.msra.mxu0 0.0
        %1080 = vmatprep.subr.mxu0 0.0
        %1081 = vmatpush1.msra.mxu0 0.0
        %1082 = vmatprep.subr.mxu0 0.0
        %1083 = vmatpush1.msra.mxu0 0.0
        %1084 = vmatprep.subr.mxu0 0.0
        %1085 = vmatpush1.msra.mxu0 0.0
        %1086 = vmatprep.subr.mxu0 0.0
        %1087 = vmatpush1.msra.mxu0 0.0
        %1088 = vmatprep.subr.mxu0 0.0
        %1089 = vmatpush1.msra.mxu0 0.0
        %1090 = vmatprep.subr.mxu0 0.0
        %1091 = vmatpush1.msra.mxu0 0.0
        %1092 = vmatprep.subr.mxu0 0.0
        %1093 = vmatpush1.msra.mxu0 0.0
        %1094 = vmatprep.subr.mxu0 0.0
        %1095 = vmatpush1.msra.mxu0 0.0
        %1096 = vmatprep.subr.mxu0 0.0
        %1097 = vmatpush1.msra.mxu0 0.0
        %1098 = vmatprep.subr.mxu0 0.0
        %1099 = vmatpush1.msra.mxu0 0.0
        %1100 = vmatprep.mubr.f32.mxu0 0.0
        %1101 = vmatmul.mubr.f32.gmra.mrb[0].mxu0 %v1034
        %v1102 = vpop.f32.mrb[0].mxu0
        %v1103 = vadd.f32 0.0, %v1102
        %v1104 = vpop.f32.mrb[0].mxu0
        %1105 = vdwg.mxu0
        %1106 = vrot.lane.b32.xlu0 %v488, 64
        %v1107 = vpop.permute.xlu0 %1106
        %v1110 = vsel %vm496, %v877, 0
        %1112 = vmatprep.subr.mxu0 0.0
        %1113 = vmatpush1.msra.mxu0 %v1107
        %1114 = vmatprep.subr.mxu0 0.0
        %1115 = vmatpush1.msra.mxu0 0.0
        %1116 = vmatprep.subr.mxu0 0.0
        %1117 = vmatpush1.msra.mxu0 0.0
        %1118 = vmatprep.subr.mxu0 0.0
        %1119 = vmatpush1.msra.mxu0 0.0
        %1120 = vmatprep.subr.mxu0 0.0
        %1121 = vmatpush1.msra.mxu0 0.0
        %1122 = vmatprep.subr.mxu0 0.0
        %1123 = vmatpush1.msra.mxu0 0.0
        %1124 = vmatprep.subr.mxu0 0.0
        %1125 = vmatpush1.msra.mxu0 0.0
        %1126 = vmatprep.subr.mxu0 0.0
        %1127 = vmatpush1.msra.mxu0 0.0
        %1128 = vmatprep.subr.mxu0 0.0
        %1129 = vmatpush1.msra.mxu0 0.0
        %1130 = vmatprep.subr.mxu0 0.0
        %1131 = vmatpush1.msra.mxu0 0.0
        %1132 = vmatprep.subr.mxu0 0.0
        %1133 = vmatpush1.msra.mxu0 0.0
        %1134 = vmatprep.subr.mxu0 0.0
        %1135 = vmatpush1.msra.mxu0 0.0
        %1136 = vmatprep.subr.mxu0 0.0
        %1137 = vmatpush1.msra.mxu0 0.0
        %1138 = vmatprep.subr.mxu0 0.0
        %1139 = vmatpush1.msra.mxu0 0.0
        %1140 = vmatprep.subr.mxu0 0.0
        %1141 = vmatpush1.msra.mxu0 0.0
        %1142 = vmatprep.subr.mxu0 0.0
        %1143 = vmatpush1.msra.mxu0 0.0
        %1144 = vmatprep.subr.mxu0 0.0
        %1145 = vmatpush1.msra.mxu0 0.0
        %1146 = vmatprep.subr.mxu0 0.0
        %1147 = vmatpush1.msra.mxu0 0.0
        %1148 = vmatprep.subr.mxu0 0.0
        %1149 = vmatpush1.msra.mxu0 0.0
        %1150 = vmatprep.subr.mxu0 0.0
        %1151 = vmatpush1.msra.mxu0 0.0
        %1152 = vmatprep.subr.mxu0 0.0
        %1153 = vmatpush1.msra.mxu0 0.0
        %1154 = vmatprep.subr.mxu0 0.0
        %1155 = vmatpush1.msra.mxu0 0.0
        %1156 = vmatprep.subr.mxu0 0.0
        %1157 = vmatpush1.msra.mxu0 0.0
        %1158 = vmatprep.subr.mxu0 0.0
        %1159 = vmatpush1.msra.mxu0 0.0
        %1160 = vmatprep.subr.mxu0 0.0
        %1161 = vmatpush1.msra.mxu0 0.0
        %1162 = vmatprep.subr.mxu0 0.0
        %1163 = vmatpush1.msra.mxu0 0.0
        %1164 = vmatprep.subr.mxu0 0.0
        %1165 = vmatpush1.msra.mxu0 0.0
        %1166 = vmatprep.subr.mxu0 0.0
        %1167 = vmatpush1.msra.mxu0 0.0
        %1168 = vmatprep.subr.mxu0 0.0
        %1169 = vmatpush1.msra.mxu0 0.0
        %1170 = vmatprep.subr.mxu0 0.0
        %1171 = vmatpush1.msra.mxu0 0.0
        %1172 = vmatprep.subr.mxu0 0.0
        %1173 = vmatpush1.msra.mxu0 0.0
        %1174 = vmatprep.subr.mxu0 0.0
        %1175 = vmatpush1.msra.mxu0 0.0
        %1176 = vmatprep.mubr.f32.mxu0 0.0
        %1177 = vmatmul.mubr.f32.gmra.mrb[0].mxu0 %v1110
        %v1178 = vpop.f32.mrb[0].mxu0
        %v1179 = vadd.f32 0.0, %v1178
        %v1180 = vpop.f32.mrb[0].mxu0
        %1181 = vdwg.mxu0
        %v1182 = vld [vmem:[#allocation7] sm:$0xff]
        %v1183 = vld [vmem:[#allocation7 + $0x8] sm:$0xff]
        %v1184 = vld [vmem:[#allocation7 + $0x10] sm:$0xff]
        %v1185 = vld [vmem:[#allocation7 + $0x18] sm:$0xff]
        %v1187 = vsel %vm496, %v951, 0
        %1189 = vmatprep.subr.mxu0 0.0
        %1190 = vmatpush1.msra.mxu0 %v1182
        %1191 = vmatprep.subr.mxu0 0.0
        %1192 = vmatpush1.msra.mxu0 0.0
        %1193 = vmatprep.subr.mxu0 0.0
        %1194 = vmatpush1.msra.mxu0 0.0
        %1195 = vmatprep.subr.mxu0 0.0
        %1196 = vmatpush1.msra.mxu0 0.0
        %1197 = vmatprep.subr.mxu0 0.0
        %1198 = vmatpush1.msra.mxu0 0.0
        %1199 = vmatprep.subr.mxu0 0.0
        %1200 = vmatpush1.msra.mxu0 0.0
        %1201 = vmatprep.subr.mxu0 0.0
        %1202 = vmatpush1.msra.mxu0 0.0
        %1203 = vmatprep.subr.mxu0 0.0
        %1204 = vmatpush1.msra.mxu0 0.0
        %1205 = vmatprep.subr.mxu0 0.0
        %1206 = vmatpush1.msra.mxu0 0.0
        %1207 = vmatprep.subr.mxu0 0.0
        %1208 = vmatpush1.msra.mxu0 0.0
        %1209 = vmatprep.subr.mxu0 0.0
        %1210 = vmatpush1.msra.mxu0 0.0
        %1211 = vmatprep.subr.mxu0 0.0
        %1212 = vmatpush1.msra.mxu0 0.0
        %1213 = vmatprep.subr.mxu0 0.0
        %1214 = vmatpush1.msra.mxu0 0.0
        %1215 = vmatprep.subr.mxu0 0.0
        %1216 = vmatpush1.msra.mxu0 0.0
        %1217 = vmatprep.subr.mxu0 0.0
        %1218 = vmatpush1.msra.mxu0 0.0
        %1219 = vmatprep.subr.mxu0 0.0
        %1220 = vmatpush1.msra.mxu0 0.0
        %1221 = vmatprep.subr.mxu0 0.0
        %1222 = vmatpush1.msra.mxu0 0.0
        %1223 = vmatprep.subr.mxu0 0.0
        %1224 = vmatpush1.msra.mxu0 0.0
        %1225 = vmatprep.subr.mxu0 0.0
        %1226 = vmatpush1.msra.mxu0 0.0
        %1227 = vmatprep.subr.mxu0 0.0
        %1228 = vmatpush1.msra.mxu0 0.0
        %1229 = vmatprep.subr.mxu0 0.0
        %1230 = vmatpush1.msra.mxu0 0.0
        %1231 = vmatprep.subr.mxu0 0.0
        %1232 = vmatpush1.msra.mxu0 0.0
        %1233 = vmatprep.subr.mxu0 0.0
        %1234 = vmatpush1.msra.mxu0 0.0
        %1235 = vmatprep.subr.mxu0 0.0
        %1236 = vmatpush1.msra.mxu0 0.0
        %1237 = vmatprep.subr.mxu0 0.0
        %1238 = vmatpush1.msra.mxu0 0.0
        %1239 = vmatprep.subr.mxu0 0.0
        %1240 = vmatpush1.msra.mxu0 0.0
        %1241 = vmatprep.subr.mxu0 0.0
        %1242 = vmatpush1.msra.mxu0 0.0
        %1243 = vmatprep.subr.mxu0 0.0
        %1244 = vmatpush1.msra.mxu0 0.0
        %1245 = vmatprep.subr.mxu0 0.0
        %1246 = vmatpush1.msra.mxu0 0.0
        %1247 = vmatprep.subr.mxu0 0.0
        %1248 = vmatpush1.msra.mxu0 0.0
        %1249 = vmatprep.subr.mxu0 0.0
        %1250 = vmatpush1.msra.mxu0 0.0
        %1251 = vmatprep.subr.mxu0 0.0
        %1252 = vmatpush1.msra.mxu0 0.0
        %1253 = vmatprep.mubr.f32.mxu0 0.0
        %1254 = vmatmul.mubr.f32.gmra.mrb[0].mxu0 %v1187
        %v1255 = vpop.f32.mrb[0].mxu0
        %v1256 = vadd.f32 0.0, %v1255
        %v1257 = vpop.f32.mrb[0].mxu0
        %1258 = vdwg.mxu0
        %v1260 = vsel %vm496, %v1027, 0
        %1262 = vmatprep.subr.mxu0 0.0
        %1263 = vmatpush1.msra.mxu0 %v1183
        %1264 = vmatprep.subr.mxu0 0.0
        %1265 = vmatpush1.msra.mxu0 0.0
        %1266 = vmatprep.subr.mxu0 0.0
        %1267 = vmatpush1.msra.mxu0 0.0
        %1268 = vmatprep.subr.mxu0 0.0
        %1269 = vmatpush1.msra.mxu0 0.0
        %1270 = vmatprep.subr.mxu0 0.0
        %1271 = vmatpush1.msra.mxu0 0.0
        %1272 = vmatprep.subr.mxu0 0.0
        %1273 = vmatpush1.msra.mxu0 0.0
        %1274 = vmatprep.subr.mxu0 0.0
        %1275 = vmatpush1.msra.mxu0 0.0
        %1276 = vmatprep.subr.mxu0 0.0
        %1277 = vmatpush1.msra.mxu0 0.0
        %1278 = vmatprep.subr.mxu0 0.0
        %1279 = vmatpush1.msra.mxu0 0.0
        %1280 = vmatprep.subr.mxu0 0.0
        %1281 = vmatpush1.msra.mxu0 0.0
        %1282 = vmatprep.subr.mxu0 0.0
        %1283 = vmatpush1.msra.mxu0 0.0
        %1284 = vmatprep.subr.mxu0 0.0
        %1285 = vmatpush1.msra.mxu0 0.0
        %1286 = vmatprep.subr.mxu0 0.0
        %1287 = vmatpush1.msra.mxu0 0.0
        %1288 = vmatprep.subr.mxu0 0.0
        %1289 = vmatpush1.msra.mxu0 0.0
        %1290 = vmatprep.subr.mxu0 0.0
        %1291 = vmatpush1.msra.mxu0 0.0
        %1292 = vmatprep.subr.mxu0 0.0
        %1293 = vmatpush1.msra.mxu0 0.0
        %1294 = vmatprep.subr.mxu0 0.0
        %1295 = vmatpush1.msra.mxu0 0.0
        %1296 = vmatprep.subr.mxu0 0.0
        %1297 = vmatpush1.msra.mxu0 0.0
        %1298 = vmatprep.subr.mxu0 0.0
        %1299 = vmatpush1.msra.mxu0 0.0
        %1300 = vmatprep.subr.mxu0 0.0
        %1301 = vmatpush1.msra.mxu0 0.0
        %1302 = vmatprep.subr.mxu0 0.0
        %1303 = vmatpush1.msra.mxu0 0.0
        %1304 = vmatprep.subr.mxu0 0.0
        %1305 = vmatpush1.msra.mxu0 0.0
        %1306 = vmatprep.subr.mxu0 0.0
        %1307 = vmatpush1.msra.mxu0 0.0
        %1308 = vmatprep.subr.mxu0 0.0
        %1309 = vmatpush1.msra.mxu0 0.0
        %1310 = vmatprep.subr.mxu0 0.0
        %1311 = vmatpush1.msra.mxu0 0.0
        %1312 = vmatprep.subr.mxu0 0.0
        %1313 = vmatpush1.msra.mxu0 0.0
        %1314 = vmatprep.subr.mxu0 0.0
        %1315 = vmatpush1.msra.mxu0 0.0
        %1316 = vmatprep.subr.mxu0 0.0
        %1317 = vmatpush1.msra.mxu0 0.0
        %1318 = vmatprep.subr.mxu0 0.0
        %1319 = vmatpush1.msra.mxu0 0.0
        %1320 = vmatprep.subr.mxu0 0.0
        %1321 = vmatpush1.msra.mxu0 0.0
        %1322 = vmatprep.subr.mxu0 0.0
        %1323 = vmatpush1.msra.mxu0 0.0
        %1324 = vmatprep.subr.mxu0 0.0
        %1325 = vmatpush1.msra.mxu0 0.0
        %1326 = vmatprep.mubr.f32.mxu0 0.0
        %1327 = vmatmul.mubr.f32.gmra.mrb[0].mxu0 %v1260
        %v1328 = vpop.f32.mrb[0].mxu0
        %v1329 = vadd.f32 0.0, %v1328
        %v1330 = vpop.f32.mrb[0].mxu0
        %1331 = vdwg.mxu0
        %v1333 = vsel %vm496, %v1103, 0
        %1335 = vmatprep.subr.mxu0 0.0
        %1336 = vmatpush1.msra.mxu0 %v1184
        %1337 = vmatprep.subr.mxu0 0.0
        %1338 = vmatpush1.msra.mxu0 0.0
        %1339 = vmatprep.subr.mxu0 0.0
        %1340 = vmatpush1.msra.mxu0 0.0
        %1341 = vmatprep.subr.mxu0 0.0
        %1342 = vmatpush1.msra.mxu0 0.0
        %1343 = vmatprep.subr.mxu0 0.0
        %1344 = vmatpush1.msra.mxu0 0.0
        %1345 = vmatprep.subr.mxu0 0.0
        %1346 = vmatpush1.msra.mxu0 0.0
        %1347 = vmatprep.subr.mxu0 0.0
        %1348 = vmatpush1.msra.mxu0 0.0
        %1349 = vmatprep.subr.mxu0 0.0
        %1350 = vmatpush1.msra.mxu0 0.0
        %1351 = vmatprep.subr.mxu0 0.0
        %1352 = vmatpush1.msra.mxu0 0.0
        %1353 = vmatprep.subr.mxu0 0.0
        %1354 = vmatpush1.msra.mxu0 0.0
        %1355 = vmatprep.subr.mxu0 0.0
        %1356 = vmatpush1.msra.mxu0 0.0
        %1357 = vmatprep.subr.mxu0 0.0
        %1358 = vmatpush1.msra.mxu0 0.0
        %1359 = vmatprep.subr.mxu0 0.0
        %1360 = vmatpush1.msra.mxu0 0.0
        %1361 = vmatprep.subr.mxu0 0.0
        %1362 = vmatpush1.msra.mxu0 0.0
        %1363 = vmatprep.subr.mxu0 0.0
        %1364 = vmatpush1.msra.mxu0 0.0
        %1365 = vmatprep.subr.mxu0 0.0
        %1366 = vmatpush1.msra.mxu0 0.0
        %1367 = vmatprep.subr.mxu0 0.0
        %1368 = vmatpush1.msra.mxu0 0.0
        %1369 = vmatprep.subr.mxu0 0.0
        %1370 = vmatpush1.msra.mxu0 0.0
        %1371 = vmatprep.subr.mxu0 0.0
        %1372 = vmatpush1.msra.mxu0 0.0
        %1373 = vmatprep.subr.mxu0 0.0
        %1374 = vmatpush1.msra.mxu0 0.0
        %1375 = vmatprep.subr.mxu0 0.0
        %1376 = vmatpush1.msra.mxu0 0.0
        %1377 = vmatprep.subr.mxu0 0.0
        %1378 = vmatpush1.msra.mxu0 0.0
        %1379 = vmatprep.subr.mxu0 0.0
        %1380 = vmatpush1.msra.mxu0 0.0
        %1381 = vmatprep.subr.mxu0 0.0
        %1382 = vmatpush1.msra.mxu0 0.0
        %1383 = vmatprep.subr.mxu0 0.0
        %1384 = vmatpush1.msra.mxu0 0.0
        %1385 = vmatprep.subr.mxu0 0.0
        %1386 = vmatpush1.msra.mxu0 0.0
        %1387 = vmatprep.subr.mxu0 0.0
        %1388 = vmatpush1.msra.mxu0 0.0
        %1389 = vmatprep.subr.mxu0 0.0
        %1390 = vmatpush1.msra.mxu0 0.0
        %1391 = vmatprep.subr.mxu0 0.0
        %1392 = vmatpush1.msra.mxu0 0.0
        %1393 = vmatprep.subr.mxu0 0.0
        %1394 = vmatpush1.msra.mxu0 0.0
        %1395 = vmatprep.subr.mxu0 0.0
        %1396 = vmatpush1.msra.mxu0 0.0
        %1397 = vmatprep.subr.mxu0 0.0
        %1398 = vmatpush1.msra.mxu0 0.0
        %1399 = vmatprep.mubr.f32.mxu0 0.0
        %1400 = vmatmul.mubr.f32.gmra.mrb[0].mxu0 %v1333
        %v1401 = vpop.f32.mrb[0].mxu0
        %v1402 = vadd.f32 0.0, %v1401
        %v1403 = vpop.f32.mrb[0].mxu0
        %1404 = vdwg.mxu0
        %v1406 = vsel %vm496, %v1179, 0
        %1408 = vmatprep.subr.mxu0 0.0
        %1409 = vmatpush1.msra.mxu0 %v1185
        %1410 = vmatprep.subr.mxu0 0.0
        %1411 = vmatpush1.msra.mxu0 0.0
        %1412 = vmatprep.subr.mxu0 0.0
        %1413 = vmatpush1.msra.mxu0 0.0
        %1414 = vmatprep.subr.mxu0 0.0
        %1415 = vmatpush1.msra.mxu0 0.0
        %1416 = vmatprep.subr.mxu0 0.0
        %1417 = vmatpush1.msra.mxu0 0.0
        %1418 = vmatprep.subr.mxu0 0.0
        %1419 = vmatpush1.msra.mxu0 0.0
        %1420 = vmatprep.subr.mxu0 0.0
        %1421 = vmatpush1.msra.mxu0 0.0
        %1422 = vmatprep.subr.mxu0 0.0
        %1423 = vmatpush1.msra.mxu0 0.0
        %1424 = vmatprep.subr.mxu0 0.0
        %1425 = vmatpush1.msra.mxu0 0.0
        %1426 = vmatprep.subr.mxu0 0.0
        %1427 = vmatpush1.msra.mxu0 0.0
        %1428 = vmatprep.subr.mxu0 0.0
        %1429 = vmatpush1.msra.mxu0 0.0
        %1430 = vmatprep.subr.mxu0 0.0
        %1431 = vmatpush1.msra.mxu0 0.0
        %1432 = vmatprep.subr.mxu0 0.0
        %1433 = vmatpush1.msra.mxu0 0.0
        %1434 = vmatprep.subr.mxu0 0.0
        %1435 = vmatpush1.msra.mxu0 0.0
        %1436 = vmatprep.subr.mxu0 0.0
        %1437 = vmatpush1.msra.mxu0 0.0
        %1438 = vmatprep.subr.mxu0 0.0
        %1439 = vmatpush1.msra.mxu0 0.0
        %1440 = vmatprep.subr.mxu0 0.0
        %1441 = vmatpush1.msra.mxu0 0.0
        %1442 = vmatprep.subr.mxu0 0.0
        %1443 = vmatpush1.msra.mxu0 0.0
        %1444 = vmatprep.subr.mxu0 0.0
        %1445 = vmatpush1.msra.mxu0 0.0
        %1446 = vmatprep.subr.mxu0 0.0
        %1447 = vmatpush1.msra.mxu0 0.0
        %1448 = vmatprep.subr.mxu0 0.0
        %1449 = vmatpush1.msra.mxu0 0.0
        %1450 = vmatprep.subr.mxu0 0.0
        %1451 = vmatpush1.msra.mxu0 0.0
        %1452 = vmatprep.subr.mxu0 0.0
        %1453 = vmatpush1.msra.mxu0 0.0
        %1454 = vmatprep.subr.mxu0 0.0
        %1455 = vmatpush1.msra.mxu0 0.0
        %1456 = vmatprep.subr.mxu0 0.0
        %1457 = vmatpush1.msra.mxu0 0.0
        %1458 = vmatprep.subr.mxu0 0.0
        %1459 = vmatpush1.msra.mxu0 0.0
        %1460 = vmatprep.subr.mxu0 0.0
        %1461 = vmatpush1.msra.mxu0 0.0
        %1462 = vmatprep.subr.mxu0 0.0
        %1463 = vmatpush1.msra.mxu0 0.0
        %1464 = vmatprep.subr.mxu0 0.0
        %1465 = vmatpush1.msra.mxu0 0.0
        %1466 = vmatprep.subr.mxu0 0.0
        %1467 = vmatpush1.msra.mxu0 0.0
        %1468 = vmatprep.subr.mxu0 0.0
        %1469 = vmatpush1.msra.mxu0 0.0
        %1470 = vmatprep.subr.mxu0 0.0
        %1471 = vmatpush1.msra.mxu0 0.0
        %1472 = vmatprep.mubr.f32.mxu0 0.0
        %1473 = vmatmul.mubr.f32.gmra.mrb[0].mxu0 %v1406
        %v1474 = vpop.f32.mrb[0].mxu0
        %v1475 = vadd.f32 0.0, %v1474
        %v1476 = vpop.f32.mrb[0].mxu0
        %1477 = vdwg.mxu0
        %v1478 = vsel %vm365, %v1256, 0.0
        %v1479 = vsel %vm365, %v1329, 0.0
        %v1480 = vadd.f32 %v1478, %v1479
        %v1481 = vsel %vm365, %v1402, 0.0
        %v1482 = vadd.f32 %v1480, %v1481
        %v1483 = vsel %vm365, %v1475, 0.0
        %v1484 = vadd.f32 %v1482, %v1483
        %v1485 = vld [vmem:[%s7] sm:$0x1]
        %v1487 = vlaneseq
        %v1488 = vshrl.u32 %v1487, 7
        %v1489 = vsub.s32 0, %v1488
        %v1490 = vrot.slane %v1485, %v1489
        %v1492 = vadd.f32 %v1484, %v1490
        %1493 = vst.msk [vmem:[%s360] sm:$0xff] %vm365, %v1492
        %s1494 = sand.u32 %s212, 1
        %s1495 = scalar_lea.sflag [#allocation4], %s1494
        %s1496 = sand.u32 %s212, 1
        %s1497 = smul.addr %s1496, 8
        %s1498 = scalar_lea.vmem [#allocation8], %s1497
        // Predicated region
        $region65: #{tpu_custom_call.1} parent=51 // pred_check
          %p1499 = pneg %p222
        $region66: #{tpu_custom_call.1} parent=51 // pred_check_branch
          %1501 = sbr.rel (%p1499) target = $region68
        $region67: #{tpu_custom_call.1} parent=51 // pred_region
          %s1503 = ssub.s32 128, 128
          %1504 = vsyncadd %s1495, %s1503
          %s1505 = smul.addr %s26, 128
          %s1506 = scalar_lea.hbm %s8, %s1505
          %s1508 = sshll.u32 %s1498, 4
          %s1509 = int_to_ptr.vmem [resolvable:$true] %s1508
          %1511 = dma.vmem_to_hbm [thread:$0]  %s1509, 128, %s1506, %s1495
        $region68: #{tpu_custom_call.1} parent=51 // pred_fallthru
          _
      $region52: #{tpu_custom_call.1} parent=5 // pred_fallthru
        _
      %p1512 = scmp.le.s32.totalorder 2, %s21
      // Predicated region
      $region69: #{tpu_custom_call.1} parent=5 // pred_check
        %p1513 = pneg %p1512
      $region70: #{tpu_custom_call.1} parent=5 // pred_check_branch
        %1515 = sbr.rel (%p1513) target = $region72
      $region71: #{tpu_custom_call.1} parent=5 // pred_region
        %s1516 = ssub.s32 %s21, 2
        // Predicated region
        $region73: #{tpu_custom_call.1} parent=71 // pred_check
          %p1517 = pneg %p228
        $region74: #{tpu_custom_call.1} parent=71 // pred_check_branch
          %1519 = sbr.rel (%p1517) target = $region76
        $region75: #{tpu_custom_call.1} parent=71 // pred_region
          %s1520 = sand.u32 %s213, 1
          %s1521 = scalar_lea.sflag [#allocation4], %s1520
          %s1522 = sand.u32 %s213, 1
          %s1523 = smul.addr %s1522, 8
          %s1524 = scalar_lea.vmem [#allocation8], %s1523
          %1525 = dma.done %s1521, 128
        $region76: #{tpu_custom_call.1} parent=71 // pred_fallthru
          _
      $region72: #{tpu_custom_call.1} parent=5 // pred_fallthru
        _
    $region6: #{tpu_custom_call.1} parent=1 // loop_footer
      %s25 = sadd.s32 1, %s21
    $region7: #{tpu_custom_call.1} parent=1 // loop_footer_branch
      %20 = sbr.rel target = $region3
    $region8: #{tpu_custom_call.1} parent=1 // loop_exit
      _
    %1526 = vsyncpa [#allocation3], 1
    %s1527 = scalar_lea.sflag [#allocation3], 1
    %1528 = vsyncpa %s1527, 1
    %1529 = vsyncpa [#allocation6], 1
    %1530 = vsyncpa [#allocation4], 1
    %s1531 = scalar_lea.sflag [#allocation4], 1
    %1532 = vsyncpa %s1531, 1

</llo_original>
